<compile_context>
chip_gen: v5e
topology: v5e:2x2
jax: 0.10.0
libtpu: 0.0.40
codegen_flags: <defaults>
</compile_context>

<pallas_src>
import functools

import jax
import jax.numpy as jnp
from jax import lax
from jax.experimental import pallas as pl
from jax.experimental.pallas import tpu as pltpu

IN_W = 8              # xyz (3) + mask (1) packed into 8 lanes
HIDDEN = 128          # pronet_hidden_dim (small test size)
EMB_DIM = 128         # vae_embedding_dim
N_EMB = 128           # vae_num_embeddings
BETA = 0.25           # vae_commitment_cost
TM_MAX = 1024         # row-tile size; double-buffered VMEM footprint ~4 MiB at 1024


def _round_up(x, m):
    return ((x + m - 1) // m) * m


# ---------------------------------------------------------------------------
# Pallas kernel: one TM-row tile of
#   encoder MLP -> clamp -> vector quantization -> decoder MLP (+ loss partials)
#
# Weight slab layout (10, 128, 128) bf16:
#   [0..2] w1,w2,w3   (H,H)      encoder hidden layers
#   [3]    w4         (H,E)      encoder projection
#   [4]    emb^T      (E,n_e)    codebook transpose (for the distance cross term)
#   [5]    emb_hi     (n_e,E)    bf16 high half of the codebook
#   [6]    emb_lo     (n_e,E)    bf16 low (residual) half of the codebook
#   [7..8] dw0,dw1    (E,H),(H,H) decoder hidden layers
#   [9]    dw2_pad    (H,128)    decoder output layer, lanes 3..127 zero
# Bias/aux slab (9, 128) f32: b0,b1,b2,b3,b4,db0,db1, ||emb||^2, db2(pad to 128)
# ---------------------------------------------------------------------------
def _pronet_vae_kernel(xm_ref, w0_ref, wslab_ref, bslab_ref,
                       enc_ref, combo_ref, stats_ref, *, bl_valid, tm):
    f32 = jnp.float32
    bf16 = jnp.bfloat16

    xm = xm_ref[...]                 # (TM, 8) f32: lanes [x, y, z, mask, 0, 0, 0, 0]
    w0 = w0_ref[...]                 # (8, H) f32, rows 3..7 zero
    bias = bslab_ref[...]            # (9, 128) f32

    b0, b1, b2, b3 = bias[0:1, :], bias[1:2, :], bias[2:3, :], bias[3:4, :]
    b4, db0, db1 = bias[4:5, :], bias[5:6, :], bias[6:7, :]
    emb_sq, db2 = bias[7:8, :], bias[8:9, :]

    # ---- encoder layer 0 (3 -> H): f32 VPU broadcast-FMAs, no near-empty MXU op ----
    h = (xm[:, 0:1] * w0[0:1, :]
         + xm[:, 1:2] * w0[1:2, :]
         + xm[:, 2:3] * w0[2:3, :]
         + b0)
    h = jnp.maximum(h, 0.0)

    def dense(a, k, b):
        return jnp.dot(a.astype(bf16), wslab_ref[k], preferred_element_type=f32) + b

    # ---- encoder layers 1..3 (H -> H, ReLU) and projection (H -> E) ----
    h = jnp.maximum(dense(h, 0, b1), 0.0)
    h = jnp.maximum(dense(h, 1, b2), 0.0)
    h = jnp.maximum(dense(h, 2, b3), 0.0)
    enc = jnp.clip(dense(h, 3, b4), -10.0, 10.0)      # torch.clamp(min=-10, max=10)
    enc_ref[...] = enc

    # ---- VectorQuantizer2 nearest-codebook search ----
    # argmin_j ||z - e_j||^2 == argmin_j (||e_j||^2 - 2 z.e_j); the per-row ||z||^2
    # term is constant along the codebook axis so it is dropped from the argmin.
    cross = jnp.dot(enc.astype(bf16), wslab_ref[4], preferred_element_type=f32)  # (TM, n_e)
    d = emb_sq - 2.0 * cross
    n_e = d.shape[-1]
    lane = lax.broadcasted_iota(jnp.int32, d.shape, 1)
    dmin = jnp.min(d, axis=-1, keepdims=True)
    idx = jnp.min(jnp.where(d == dmin, lane, n_e), axis=-1, keepdims=True)   # first argmin
    onehot = (lane == idx)                                                    # bool (TM, n_e)

    # zq via bf16 hi/lo codebook split: 2 bf16 MXU passes (f32 accumulation) instead
    # of a 3-6 pass f32 matmul; row selection stays exact because one-hot rows have a
    # single nonzero and 0/1 is exact in bf16.
    onehot_bf = onehot.astype(bf16)
    zq = (jnp.dot(onehot_bf, wslab_ref[5], preferred_element_type=f32)
          + jnp.dot(onehot_bf, wslab_ref[6], preferred_element_type=f32))     # (TM, E)

    # ---- decoder: Linear(E,H) ReLU Linear(H,H) ReLU Linear(H,3 padded to 128) ----
    dh = jnp.maximum(dense(zq, 7, db0), 0.0)
    dh = jnp.maximum(dense(dh, 8, db1), 0.0)
    recon = dense(dh, 9, db2)                                   # (TM, 128), lanes 3.. = 0

    # Thin combined output: lanes 0..2 = reconstructed xyz, lane 3 = argmin index.
    lane8 = lax.broadcasted_iota(jnp.int32, (tm, IN_W), 1)
    combo_ref[...] = jnp.where(lane8 == 3, idx.astype(f32), recon[:, :IN_W])

    # ---- per-tile partials (finished in the wrapper) ----
    # TODO(synk): exact VectorQuantizer2 source not provided; masked mean assumed.
    m = xm[:, 3:4]                                              # (TM, 1) mask in {0,1}
    diff = zq - enc
    loss_num = jnp.sum(diff * diff * m)
    mask_sum = jnp.sum(m)

    # codebook-usage counts: exclude rows that only exist for TM padding, but keep
    # dense-batch padded rows to match the reference e_mean.
    row = pl.program_id(0) * tm + lax.broadcasted_iota(jnp.int32, (tm, 1), 0)
    valid = (row < bl_valid).astype(f32)
    esum = jnp.sum(jnp.where(onehot, valid, 0.0), axis=0, keepdims=True)      # (1, n_e)

    row0 = jnp.concatenate(
        [esum,
         jnp.full((1, 128), loss_num, f32),
         jnp.full((1, 128), mask_sum, f32)], axis=1)                          # (1, 384)
    stats_ref[...] = jnp.broadcast_to(row0, (8, 3 * 128))


# ---------------------------------------------------------------------------
# Wrapper / glue
# ---------------------------------------------------------------------------
def to_dense_batch_jax(x, batch, num_graphs, max_len):
    """Plain-JAX equivalent of torch_geometric's to_dense_batch."""
    n = x.shape[0]
    counts = jnp.bincount(batch, length=num_graphs).astype(jnp.int32)
    offsets = jnp.concatenate([jnp.zeros((1,), jnp.int32), jnp.cumsum(counts)[:-1]])
    pos = jnp.arange(n, dtype=jnp.int32) - offsets[batch]
    dense = jnp.zeros((num_graphs, max_len, 3), jnp.float32).at[batch, pos].set(x)
    mask = jnp.zeros((num_graphs, max_len), bool).at[batch, pos].set(True)
    return dense, mask


def init_params(key, hidden=HIDDEN, e_dim=EMB_DIM, n_e=N_EMB):
    ks = jax.random.split(key, 12)

    def lin(k, fin, fout):
        k1, k2 = jax.random.split(k)
        s = 1.0 / jnp.sqrt(jnp.float32(fin))
        w = jax.random.uniform(k1, (fin, fout), jnp.float32, -s, s)
        b = jax.random.uniform(k2, (1, fout), jnp.float32, -s, s)
        return w, b

    p = {}
    # encoder: Linear(3,H) [Linear(H,H)]*3 Linear(H,E)
    w0, b0 = lin(ks[0], 3, hidden)
    p["w0"] = jnp.zeros((IN_W, hidden), jnp.float32).at[:3, :].set(w0)
    p["b0"] = b0
    for i, k in zip((1, 2, 3), ks[1:4]):
        p[f"w{i}"], p[f"b{i}"] = lin(k, hidden, hidden)
    p["w4"], p["b4"] = lin(ks[4], hidden, e_dim)
    # VQ codebook: uniform(-1/n_e, 1/n_e)
    p["emb"] = jax.random.uniform(ks[5], (n_e, e_dim), jnp.float32, -1.0 / n_e, 1.0 / n_e)
    # decoder: Linear(E,H) Linear(H,H) Linear(H,3)
    p["dw0"], p["db0"] = lin(ks[6], e_dim, hidden)
    p["dw1"], p["db1"] = lin(ks[7], hidden, hidden)
    dw2, db2 = lin(ks[8], hidden, 3)
    p["dw2"] = jnp.zeros((hidden, IN_W), jnp.float32).at[:, :3].set(dw2)
    p["db2"] = jnp.zeros((1, IN_W), jnp.float32).at[:, :3].set(db2)
    return p


@functools.partial(jax.jit, static_argnames=("num_graphs", "max_len"))
def simple_pronet_vae_forward(coords_ca, batch_idx, params, num_graphs, max_len):
    # TODO(synk): ProNetConverter is not used by the reference forward; omitted.
    dense_x, mask = to_dense_batch_jax(coords_ca, batch_idx, num_graphs, max_len)

    bl = num_graphs * max_len
    tm = min(TM_MAX, _round_up(bl, 128))
    num_tiles = _round_up(bl, tm) // tm
    if num_tiles > 1 and num_tiles % 2 == 1:
        num_tiles += 1                     # even tile count keeps both v7x TCs busy
    bl_pad = num_tiles * tm

    f32, bf16 = jnp.float32, jnp.bfloat16

    # thin packed input: lanes [x, y, z, mask, 0, 0, 0, 0]
    xm = jnp.zeros((bl_pad, IN_W), f32)
    xm = xm.at[:bl, :3].set(dense_x.reshape(bl, 3))
    xm = xm.at[:bl, 3].set(mask.reshape(bl).astype(f32))

    # codebook prework hoisted out of the kernel
    emb = params["emb"]                                       # (n_e, E) f32
    emb_lo_f32 = emb - emb.astype(bf16).astype(f32)           # residual of bf16 rounding
    emb_sq = jnp.sum(emb * emb, axis=1)                       # (n_e,) f32
    dw2_pad = jnp.zeros((HIDDEN, 128), f32).at[:, :IN_W].set(params["dw2"])
    db2_pad = jnp.zeros((128,), f32).at[:IN_W].set(params["db2"][0])

    # consolidated operand slabs (fetched once: constant index maps)
    wslab = jnp.stack([
        params["w1"], params["w2"], params["w3"], params["w4"],
        emb.T, emb, emb_lo_f32,
        params["dw0"], params["dw1"], dw2_pad,
    ]).astype(bf16)                                           # (10, 128, 128) bf16
    bslab = jnp.stack([
        params["b0"][0], params["b1"][0], params["b2"][0], params["b3"][0],
        params["b4"][0], params["db0"][0], params["db1"][0],
        emb_sq, db2_pad,
    ])                                                        # (9, 128) f32

    in_specs = [
        pl.BlockSpec((tm, IN_W), lambda i: (i, 0)),               # xm (thin rows)
        pl.BlockSpec((IN_W, HIDDEN), lambda i: (0, 0)),           # w0 (const)
        pl.BlockSpec((10, HIDDEN, HIDDEN), lambda i: (0, 0, 0)),  # weight slab (const)
        pl.BlockSpec((9, HIDDEN), lambda i: (0, 0)),              # bias/aux slab (const)
    ]
    out_specs = (
        pl.BlockSpec((tm, EMB_DIM), lambda i: (i, 0)),            # encoded
        pl.BlockSpec((tm, IN_W), lambda i: (i, 0)),               # recon xyz + idx
        pl.BlockSpec((8, 3 * 128), lambda i: (i, 0)),             # per-tile stats
    )
    out_shapes = (
        jax.ShapeDtypeStruct((bl_pad, EMB_DIM), f32),
        jax.ShapeDtypeStruct((bl_pad, IN_W), f32),
        jax.ShapeDtypeStruct((num_tiles * 8, 3 * 128), f32),
    )

    flops = bl_pad * (10 * 2 * HIDDEN * HIDDEN + 6 * HIDDEN + 8 * HIDDEN)
    bytes_accessed = (
        bl_pad * IN_W * 4                           # xm read
        + bl_pad * (EMB_DIM * 4 + IN_W * 4)         # enc + combo writes
        + num_tiles * 8 * 3 * 128 * 4               # per-tile stats
        + 10 * HIDDEN * HIDDEN * 2                  # bf16 weight slab
        + (9 + IN_W) * HIDDEN * 4                   # bias slab + w0
    )

    enc, combo, stats = pl.pallas_call(
        functools.partial(_pronet_vae_kernel, bl_valid=bl, tm=tm),
        out_shape=out_shapes,
        grid=(num_tiles,),
        in_specs=in_specs,
        out_specs=out_specs,
        compiler_params=pltpu.CompilerParams(
            dimension_semantics=("parallel",),
            # ~4 MiB double-buffered footprint at TM=1024; safe on v5e/v6e/v7x.
            vmem_limit_bytes=32 * 1024 * 1024,
        ),
        cost_estimate=pl.CostEstimate(
            flops=flops, transcendentals=0, bytes_accessed=bytes_accessed),
    )(xm, params["w0"], wslab, bslab)

    # finish the tiny global reductions outside the kernel
    tile_stats = stats.reshape(num_tiles, 8, 3 * 128)[:, 0, :]
    esum = tile_stats[:, :N_EMB]
    loss_total = jnp.sum(tile_stats[:, N_EMB])
    mask_total = jnp.sum(tile_stats[:, 2 * N_EMB])

    # TODO(synk): exact VectorQuantizer2 source not provided; masked-mean
    # straight-through forward value assumed: (1+beta) * mean_masked ||z_q - z||^2.
    vae_loss = (1.0 + BETA) * loss_total / jnp.maximum(mask_total * EMB_DIM, 1.0)

    e_mean = jnp.sum(esum, axis=0) / float(bl)
    perplexity = jnp.exp(-jnp.sum(e_mean * jnp.log(e_mean + 1e-10)))

    idx = combo[:bl, 3].astype(jnp.int32)                     # (BL,)
    quantized = emb[idx]                                      # exact f32 codebook rows
    recon = combo[:bl, :3]

    return {
        "reconstructed_positions": recon.reshape(num_graphs, max_len, 3),
        "vae_loss": vae_loss,
        "perplexity": perplexity,
        "encoded": enc[:bl].reshape(num_graphs, max_len, EMB_DIM),
        "quantized": quantized.reshape(num_graphs, max_len, EMB_DIM),
        "mask": mask,
        "min_encoding_indices": idx,
    }


if __name__ == "__main__":
    key = jax.random.PRNGKey(0)
    k_pos, k_params = jax.random.split(key)

    # synthetic "PyG batch": 2 proteins with 8 and 6 CA atoms, max_len = 8
    num_graphs, max_len = 2, 8
    coords_ca = jax.random.normal(k_pos, (14, 3), jnp.float32) * 5.0
    batch_idx = jnp.concatenate(
        [jnp.zeros((8,), jnp.int32), jnp.ones((6,), jnp.int32)]
    )

    params = init_params(k_params)

    out = simple_pronet_vae_forward(coords_ca, batch_idx, params, num_graphs, max_len)
    out = jax.block_until_ready(out)

    assert out["reconstructed_positions"].shape == (num_graphs, max_len, 3)
    assert out["encoded"].shape == (num_graphs, max_len, EMB_DIM)
    assert out["quantized"].shape == (num_graphs, max_len, EMB_DIM)
    assert out["mask"].shape == (num_graphs, max_len)
    assert out["min_encoding_indices"].shape == (num_graphs * max_len,)
    assert bool(jnp.all(out["min_encoding_indices"] >= 0))
    assert bool(jnp.all(out["min_encoding_indices"] < N_EMB))
    assert bool(jnp.isfinite(out["vae_loss"]))
    assert bool(jnp.isfinite(out["perplexity"]))
    assert bool(jnp.all(jnp.isfinite(out["reconstructed_positions"])))

    print("KERNEL_OK")
</pallas_src>

<mosaic_0001>
module attributes {stable_mosaic.version = 11 : i64} {
  func.func @_pronet_vae_kernel(%arg0: i32, %arg1: memref<128x8xf32, #tpu.memory_space<vmem>>, %arg2: memref<8x128xf32, #tpu.memory_space<vmem>>, %arg3: memref<10x128x128xbf16, #tpu.memory_space<vmem>>, %arg4: memref<9x128xf32, #tpu.memory_space<vmem>>, %arg5: memref<128x128xf32, #tpu.memory_space<vmem>>, %arg6: memref<128x8xf32, #tpu.memory_space<vmem>>, %arg7: memref<8x384xf32, #tpu.memory_space<vmem>>) attributes {dimension_semantics = [#tpu.dimension_semantics<parallel>], iteration_bounds = array<i64: 1>, scalar_prefetch = 0 : i64, scratch_operands = 0 : i64, tpu.core_type = #tpu.core_type<tc>, window_params = [{transform_indices = @transform_0, window_bounds = array<i64: 128, 8>}, {pipeline_mode = #tpu.pipeline_mode<synchronous>, transform_indices = @transform_1, window_bounds = array<i64: 8, 128>}, {pipeline_mode = #tpu.pipeline_mode<synchronous>, transform_indices = @transform_2, window_bounds = array<i64: 10, 128, 128>}, {pipeline_mode = #tpu.pipeline_mode<synchronous>, transform_indices = @transform_3, window_bounds = array<i64: 9, 128>}, {transform_indices = @transform_4, window_bounds = array<i64: 128, 128>}, {transform_indices = @transform_5, window_bounds = array<i64: 128, 8>}, {transform_indices = @transform_6, window_bounds = array<i64: 8, 384>}]} {
    %c0 = arith.constant 0 : index
    %c0_0 = arith.constant 0 : index
    %0 = vector.load %arg1[%c0, %c0_0] : memref<128x8xf32, #tpu.memory_space<vmem>>, vector<128x8xf32>
    %c0_1 = arith.constant 0 : index
    %c0_2 = arith.constant 0 : index
    %1 = vector.load %arg2[%c0_1, %c0_2] : memref<8x128xf32, #tpu.memory_space<vmem>>, vector<8x128xf32>
    %c0_3 = arith.constant 0 : index
    %c0_4 = arith.constant 0 : index
    %2 = vector.load %arg4[%c0_3, %c0_4] : memref<9x128xf32, #tpu.memory_space<vmem>>, vector<9x128xf32>
    %3 = vector.extract_strided_slice %2 {offsets = [0, 0], sizes = [1, 128], strides = [1, 1]} : vector<9x128xf32> to vector<1x128xf32>
    %4 = vector.extract_strided_slice %2 {offsets = [1, 0], sizes = [1, 128], strides = [1, 1]} : vector<9x128xf32> to vector<1x128xf32>
    %5 = vector.extract_strided_slice %2 {offsets = [2, 0], sizes = [1, 128], strides = [1, 1]} : vector<9x128xf32> to vector<1x128xf32>
    %6 = vector.extract_strided_slice %2 {offsets = [3, 0], sizes = [1, 128], strides = [1, 1]} : vector<9x128xf32> to vector<1x128xf32>
    %7 = vector.extract_strided_slice %2 {offsets = [4, 0], sizes = [1, 128], strides = [1, 1]} : vector<9x128xf32> to vector<1x128xf32>
    %8 = vector.extract_strided_slice %2 {offsets = [5, 0], sizes = [1, 128], strides = [1, 1]} : vector<9x128xf32> to vector<1x128xf32>
    %9 = vector.extract_strided_slice %2 {offsets = [6, 0], sizes = [1, 128], strides = [1, 1]} : vector<9x128xf32> to vector<1x128xf32>
    %10 = vector.extract_strided_slice %2 {offsets = [7, 0], sizes = [1, 128], strides = [1, 1]} : vector<9x128xf32> to vector<1x128xf32>
    %11 = vector.extract_strided_slice %2 {offsets = [8, 0], sizes = [1, 128], strides = [1, 1]} : vector<9x128xf32> to vector<1x128xf32>
    %12 = vector.extract_strided_slice %0 {offsets = [0, 0], sizes = [128, 1], strides = [1, 1]} : vector<128x8xf32> to vector<128x1xf32>
    %13 = vector.extract_strided_slice %1 {offsets = [0, 0], sizes = [1, 128], strides = [1, 1]} : vector<8x128xf32> to vector<1x128xf32>
    %14 = vector.broadcast %12 : vector<128x1xf32> to vector<128x128xf32>
    %15 = vector.broadcast %13 : vector<1x128xf32> to vector<128x128xf32>
    %16 = arith.mulf %14, %15 : vector<128x128xf32>
    %17 = vector.extract_strided_slice %0 {offsets = [0, 1], sizes = [128, 1], strides = [1, 1]} : vector<128x8xf32> to vector<128x1xf32>
    %18 = vector.extract_strided_slice %1 {offsets = [1, 0], sizes = [1, 128], strides = [1, 1]} : vector<8x128xf32> to vector<1x128xf32>
    %19 = vector.broadcast %17 : vector<128x1xf32> to vector<128x128xf32>
    %20 = vector.broadcast %18 : vector<1x128xf32> to vector<128x128xf32>
    %21 = arith.mulf %19, %20 : vector<128x128xf32>
    %22 = arith.addf %16, %21 : vector<128x128xf32>
    %23 = vector.extract_strided_slice %0 {offsets = [0, 2], sizes = [128, 1], strides = [1, 1]} : vector<128x8xf32> to vector<128x1xf32>
    %24 = vector.extract_strided_slice %1 {offsets = [2, 0], sizes = [1, 128], strides = [1, 1]} : vector<8x128xf32> to vector<1x128xf32>
    %25 = vector.broadcast %23 : vector<128x1xf32> to vector<128x128xf32>
    %26 = vector.broadcast %24 : vector<1x128xf32> to vector<128x128xf32>
    %27 = arith.mulf %25, %26 : vector<128x128xf32>
    %28 = arith.addf %22, %27 : vector<128x128xf32>
    %29 = vector.broadcast %3 : vector<1x128xf32> to vector<128x128xf32>
    %30 = arith.addf %28, %29 : vector<128x128xf32>
    %cst = arith.constant 0.000000e+00 : f32
    %31 = vector.broadcast %cst : f32 to vector<128x128xf32>
    %32 = arith.maximumf %30, %31 : vector<128x128xf32>
    %33 = arith.truncf %32 : vector<128x128xf32> to vector<128x128xbf16>
    %c0_5 = arith.constant 0 : index
    %c0_6 = arith.constant 0 : index
    %c0_7 = arith.constant 0 : index
    %34 = vector.load %arg3[%c0_5, %c0_6, %c0_7] : memref<10x128x128xbf16, #tpu.memory_space<vmem>>, vector<1x128x128xbf16>
    %35 = vector.shape_cast %34 : vector<1x128x128xbf16> to vector<128x128xbf16>
    %cst_8 = arith.constant dense<0.000000e+00> : vector<128x128xf32>
    %36 = tpu.matmul %33, %35, %cst_8 {dimension_numbers = #tpu.dot_dimension_numbers<[1], [0], [0], [1], [0, 0, 1, 1], [], []>} : vector<128x128xbf16>, vector<128x128xbf16>, vector<128x128xf32> -> vector<128x128xf32>
    %37 = vector.broadcast %4 : vector<1x128xf32> to vector<128x128xf32>
    %38 = arith.addf %36, %37 : vector<128x128xf32>
    %cst_9 = arith.constant 0.000000e+00 : f32
    %39 = vector.broadcast %cst_9 : f32 to vector<128x128xf32>
    %40 = arith.maximumf %38, %39 : vector<128x128xf32>
    %41 = arith.truncf %40 : vector<128x128xf32> to vector<128x128xbf16>
    %c1 = arith.constant 1 : index
    %c0_10 = arith.constant 0 : index
    %c0_11 = arith.constant 0 : index
    %42 = vector.load %arg3[%c1, %c0_10, %c0_11] : memref<10x128x128xbf16, #tpu.memory_space<vmem>>, vector<1x128x128xbf16>
    %43 = vector.shape_cast %42 : vector<1x128x128xbf16> to vector<128x128xbf16>
    %cst_12 = arith.constant dense<0.000000e+00> : vector<128x128xf32>
    %44 = tpu.matmul %41, %43, %cst_12 {dimension_numbers = #tpu.dot_dimension_numbers<[1], [0], [0], [1], [0, 0, 1, 1], [], []>} : vector<128x128xbf16>, vector<128x128xbf16>, vector<128x128xf32> -> vector<128x128xf32>
    %45 = vector.broadcast %5 : vector<1x128xf32> to vector<128x128xf32>
    %46 = arith.addf %44, %45 : vector<128x128xf32>
    %cst_13 = arith.constant 0.000000e+00 : f32
    %47 = vector.broadcast %cst_13 : f32 to vector<128x128xf32>
    %48 = arith.maximumf %46, %47 : vector<128x128xf32>
    %49 = arith.truncf %48 : vector<128x128xf32> to vector<128x128xbf16>
    %c2 = arith.constant 2 : index
    %c0_14 = arith.constant 0 : index
    %c0_15 = arith.constant 0 : index
    %50 = vector.load %arg3[%c2, %c0_14, %c0_15] : memref<10x128x128xbf16, #tpu.memory_space<vmem>>, vector<1x128x128xbf16>
    %51 = vector.shape_cast %50 : vector<1x128x128xbf16> to vector<128x128xbf16>
    %cst_16 = arith.constant dense<0.000000e+00> : vector<128x128xf32>
    %52 = tpu.matmul %49, %51, %cst_16 {dimension_numbers = #tpu.dot_dimension_numbers<[1], [0], [0], [1], [0, 0, 1, 1], [], []>} : vector<128x128xbf16>, vector<128x128xbf16>, vector<128x128xf32> -> vector<128x128xf32>
    %53 = vector.broadcast %6 : vector<1x128xf32> to vector<128x128xf32>
    %54 = arith.addf %52, %53 : vector<128x128xf32>
    %cst_17 = arith.constant 0.000000e+00 : f32
    %55 = vector.broadcast %cst_17 : f32 to vector<128x128xf32>
    %56 = arith.maximumf %54, %55 : vector<128x128xf32>
    %57 = arith.truncf %56 : vector<128x128xf32> to vector<128x128xbf16>
    %c3 = arith.constant 3 : index
    %c0_18 = arith.constant 0 : index
    %c0_19 = arith.constant 0 : index
    %58 = vector.load %arg3[%c3, %c0_18, %c0_19] : memref<10x128x128xbf16, #tpu.memory_space<vmem>>, vector<1x128x128xbf16>
    %59 = vector.shape_cast %58 : vector<1x128x128xbf16> to vector<128x128xbf16>
    %cst_20 = arith.constant dense<0.000000e+00> : vector<128x128xf32>
    %60 = tpu.matmul %57, %59, %cst_20 {dimension_numbers = #tpu.dot_dimension_numbers<[1], [0], [0], [1], [0, 0, 1, 1], [], []>} : vector<128x128xbf16>, vector<128x128xbf16>, vector<128x128xf32> -> vector<128x128xf32>
    %61 = vector.broadcast %7 : vector<1x128xf32> to vector<128x128xf32>
    %62 = arith.addf %60, %61 : vector<128x128xf32>
    %cst_21 = arith.constant -1.000000e+01 : f32
    %cst_22 = arith.constant 1.000000e+01 : f32
    %63 = vector.broadcast %cst_21 : f32 to vector<128x128xf32>
    %64 = arith.maximumf %63, %62 : vector<128x128xf32>
    %65 = vector.broadcast %cst_22 : f32 to vector<128x128xf32>
    %66 = arith.minimumf %65, %64 : vector<128x128xf32>
    %c0_23 = arith.constant 0 : index
    %c0_24 = arith.constant 0 : index
    %67 = vector.load %arg5[%c0_23, %c0_24] : memref<128x128xf32, #tpu.memory_space<vmem>>, vector<128x128xf32>
    tpu.vector_store %arg5[%c0_23, %c0_24], %66 {strides = array<i32>} : memref<128x128xf32, #tpu.memory_space<vmem>>, vector<128x128xf32>,
    %68 = arith.truncf %66 : vector<128x128xf32> to vector<128x128xbf16>
    %c4 = arith.constant 4 : index
    %c0_25 = arith.constant 0 : index
    %c0_26 = arith.constant 0 : index
    %69 = vector.load %arg3[%c4, %c0_25, %c0_26] : memref<10x128x128xbf16, #tpu.memory_space<vmem>>, vector<1x128x128xbf16>
    %70 = vector.shape_cast %69 : vector<1x128x128xbf16> to vector<128x128xbf16>
    %cst_27 = arith.constant dense<0.000000e+00> : vector<128x128xf32>
    %71 = tpu.matmul %68, %70, %cst_27 {dimension_numbers = #tpu.dot_dimension_numbers<[1], [0], [0], [1], [0, 0, 1, 1], [], []>} : vector<128x128xbf16>, vector<128x128xbf16>, vector<128x128xf32> -> vector<128x128xf32>
    %cst_28 = arith.constant 2.000000e+00 : f32
    %72 = vector.broadcast %cst_28 : f32 to vector<128x128xf32>
    %73 = arith.mulf %72, %71 : vector<128x128xf32>
    %74 = vector.broadcast %10 : vector<1x128xf32> to vector<128x128xf32>
    %75 = arith.subf %74, %73 : vector<128x128xf32>
    %76 = tpu.iota {dimensions = array<i32: 1>} : vector<128x128xi32>
    %cst_29 = arith.constant dense<0x7F800000> : vector<128xf32>
    %77 = vector.multi_reduction <minimumf>, %75, %cst_29 [1] : vector<128x128xf32> to vector<128xf32>
    %78 = vector.shape_cast %77 : vector<128xf32> to vector<128x1xf32>
    %79 = vector.broadcast %78 : vector<128x1xf32> to vector<128x128xf32>
    %80 = arith.cmpf oeq, %75, %79 : vector<128x128xf32>
    %c128_i32 = arith.constant 128 : i32
    %81 = vector.broadcast %c128_i32 : i32 to vector<128x128xi32>
    %82 = arith.select %80, %76, %81 : vector<128x128xi1>, vector<128x128xi32>
    %cst_30 = arith.constant dense<2147483647> : vector<128xi32>
    %83 = vector.multi_reduction <minsi>, %82, %cst_30 [1] : vector<128x128xi32> to vector<128xi32>
    %84 = vector.shape_cast %83 : vector<128xi32> to vector<128x1xi32>
    %85 = vector.broadcast %84 : vector<128x1xi32> to vector<128x128xi32>
    %86 = arith.cmpi eq, %76, %85 : vector<128x128xi32>
    %87 = arith.extui %86 : vector<128x128xi1> to vector<128x128xi32>
    %88 = arith.sitofp %87 : vector<128x128xi32> to vector<128x128xf32>
    %89 = arith.truncf %88 : vector<128x128xf32> to vector<128x128xbf16>
    %c5 = arith.constant 5 : index
    %c0_31 = arith.constant 0 : index
    %c0_32 = arith.constant 0 : index
    %90 = vector.load %arg3[%c5, %c0_31, %c0_32] : memref<10x128x128xbf16, #tpu.memory_space<vmem>>, vector<1x128x128xbf16>
    %91 = vector.shape_cast %90 : vector<1x128x128xbf16> to vector<128x128xbf16>
    %cst_33 = arith.constant dense<0.000000e+00> : vector<128x128xf32>
    %92 = tpu.matmul %89, %91, %cst_33 {dimension_numbers = #tpu.dot_dimension_numbers<[1], [0], [0], [1], [0, 0, 1, 1], [], []>} : vector<128x128xbf16>, vector<128x128xbf16>, vector<128x128xf32> -> vector<128x128xf32>
    %c6 = arith.constant 6 : index
    %c0_34 = arith.constant 0 : index
    %c0_35 = arith.constant 0 : index
    %93 = vector.load %arg3[%c6, %c0_34, %c0_35] : memref<10x128x128xbf16, #tpu.memory_space<vmem>>, vector<1x128x128xbf16>
    %94 = vector.shape_cast %93 : vector<1x128x128xbf16> to vector<128x128xbf16>
    %cst_36 = arith.constant dense<0.000000e+00> : vector<128x128xf32>
    %95 = tpu.matmul %89, %94, %cst_36 {dimension_numbers = #tpu.dot_dimension_numbers<[1], [0], [0], [1], [0, 0, 1, 1], [], []>} : vector<128x128xbf16>, vector<128x128xbf16>, vector<128x128xf32> -> vector<128x128xf32>
    %96 = arith.addf %92, %95 : vector<128x128xf32>
    %97 = arith.truncf %96 : vector<128x128xf32> to vector<128x128xbf16>
    %c7 = arith.constant 7 : index
    %c0_37 = arith.constant 0 : index
    %c0_38 = arith.constant 0 : index
    %98 = vector.load %arg3[%c7, %c0_37, %c0_38] : memref<10x128x128xbf16, #tpu.memory_space<vmem>>, vector<1x128x128xbf16>
    %99 = vector.shape_cast %98 : vector<1x128x128xbf16> to vector<128x128xbf16>
    %cst_39 = arith.constant dense<0.000000e+00> : vector<128x128xf32>
    %100 = tpu.matmul %97, %99, %cst_39 {dimension_numbers = #tpu.dot_dimension_numbers<[1], [0], [0], [1], [0, 0, 1, 1], [], []>} : vector<128x128xbf16>, vector<128x128xbf16>, vector<128x128xf32> -> vector<128x128xf32>
    %101 = vector.broadcast %8 : vector<1x128xf32> to vector<128x128xf32>
    %102 = arith.addf %100, %101 : vector<128x128xf32>
    %cst_40 = arith.constant 0.000000e+00 : f32
    %103 = vector.broadcast %cst_40 : f32 to vector<128x128xf32>
    %104 = arith.maximumf %102, %103 : vector<128x128xf32>
    %105 = arith.truncf %104 : vector<128x128xf32> to vector<128x128xbf16>
    %c8 = arith.constant 8 : index
    %c0_41 = arith.constant 0 : index
    %c0_42 = arith.constant 0 : index
    %106 = vector.load %arg3[%c8, %c0_41, %c0_42] : memref<10x128x128xbf16, #tpu.memory_space<vmem>>, vector<1x128x128xbf16>
    %107 = vector.shape_cast %106 : vector<1x128x128xbf16> to vector<128x128xbf16>
    %cst_43 = arith.constant dense<0.000000e+00> : vector<128x128xf32>
    %108 = tpu.matmul %105, %107, %cst_43 {dimension_numbers = #tpu.dot_dimension_numbers<[1], [0], [0], [1], [0, 0, 1, 1], [], []>} : vector<128x128xbf16>, vector<128x128xbf16>, vector<128x128xf32> -> vector<128x128xf32>
    %109 = vector.broadcast %9 : vector<1x128xf32> to vector<128x128xf32>
    %110 = arith.addf %108, %109 : vector<128x128xf32>
    %cst_44 = arith.constant 0.000000e+00 : f32
    %111 = vector.broadcast %cst_44 : f32 to vector<128x128xf32>
    %112 = arith.maximumf %110, %111 : vector<128x128xf32>
    %113 = arith.truncf %112 : vector<128x128xf32> to vector<128x128xbf16>
    %c9 = arith.constant 9 : index
    %c0_45 = arith.constant 0 : index
    %c0_46 = arith.constant 0 : index
    %114 = vector.load %arg3[%c9, %c0_45, %c0_46] : memref<10x128x128xbf16, #tpu.memory_space<vmem>>, vector<1x128x128xbf16>
    %115 = vector.shape_cast %114 : vector<1x128x128xbf16> to vector<128x128xbf16>
    %cst_47 = arith.constant dense<0.000000e+00> : vector<128x128xf32>
    %116 = tpu.matmul %113, %115, %cst_47 {dimension_numbers = #tpu.dot_dimension_numbers<[1], [0], [0], [1], [0, 0, 1, 1], [], []>} : vector<128x128xbf16>, vector<128x128xbf16>, vector<128x128xf32> -> vector<128x128xf32>
    %117 = vector.broadcast %11 : vector<1x128xf32> to vector<128x128xf32>
    %118 = arith.addf %116, %117 : vector<128x128xf32>
    %119 = tpu.iota {dimensions = array<i32: 1>} : vector<128x8xi32>
    %c3_i32 = arith.constant 3 : i32
    %120 = vector.broadcast %c3_i32 : i32 to vector<128x8xi32>
    %121 = arith.cmpi eq, %119, %120 : vector<128x8xi32>
    %122 = arith.sitofp %84 : vector<128x1xi32> to vector<128x1xf32>
    %123 = vector.extract_strided_slice %118 {offsets = [0, 0], sizes = [128, 8], strides = [1, 1]} : vector<128x128xf32> to vector<128x8xf32>
    %124 = vector.shape_cast %122 : vector<128x1xf32> to vector<128x1xf32>
    %125 = vector.broadcast %124 : vector<128x1xf32> to vector<128x8xf32>
    %126 = arith.select %121, %125, %123 : vector<128x8xi1>, vector<128x8xf32>
    %c0_48 = arith.constant 0 : index
    %c0_49 = arith.constant 0 : index
    %127 = vector.load %arg6[%c0_48, %c0_49] : memref<128x8xf32, #tpu.memory_space<vmem>>, vector<128x8xf32>
    tpu.vector_store %arg6[%c0_48, %c0_49], %126 {strides = array<i32>} : memref<128x8xf32, #tpu.memory_space<vmem>>, vector<128x8xf32>,
    %128 = vector.extract_strided_slice %0 {offsets = [0, 3], sizes = [128, 1], strides = [1, 1]} : vector<128x8xf32> to vector<128x1xf32>
    %129 = arith.subf %96, %66 : vector<128x128xf32>
    %130 = arith.mulf %129, %129 : vector<128x128xf32>
    %131 = vector.broadcast %128 : vector<128x1xf32> to vector<128x128xf32>
    %132 = arith.mulf %130, %131 : vector<128x128xf32>
    %133 = vector.shape_cast %132 : vector<128x128xf32> to vector<1x128x128xf32>
    %cst_50 = arith.constant dense<0.000000e+00> : vector<1xf32>
    %134 = vector.multi_reduction <add>, %133, %cst_50 [1, 2] : vector<1x128x128xf32> to vector<1xf32>
    %135 = vector.shape_cast %134 : vector<1xf32> to vector<1x1x1xf32>
    %136 = vector.extract %135[0, 0, 0] : f32 from vector<1x1x1xf32>
    %137 = vector.shape_cast %128 : vector<128x1xf32> to vector<1x128x1xf32>
    %cst_51 = arith.constant dense<0.000000e+00> : vector<1xf32>
    %138 = vector.multi_reduction <add>, %137, %cst_51 [1, 2] : vector<1x128x1xf32> to vector<1xf32>
    %139 = vector.shape_cast %138 : vector<1xf32> to vector<1x1x1xf32>
    %140 = vector.extract %139[0, 0, 0] : f32 from vector<1x1x1xf32>
    %c128_i32_52 = arith.constant 128 : i32
    %141 = arith.muli %arg0, %c128_i32_52 : i32
    %142 = tpu.iota {dimensions = array<i32: 0>} : vector<128x1xi32>
    %143 = vector.broadcast %141 : i32 to vector<128x1xi32>
    %144 = arith.addi %143, %142 : vector<128x1xi32>
    %c16_i32 = arith.constant 16 : i32
    %145 = vector.broadcast %c16_i32 : i32 to vector<128x1xi32>
    %146 = arith.cmpi slt, %144, %145 : vector<128x1xi32>
    %147 = arith.extui %146 : vector<128x1xi1> to vector<128x1xi32>
    %148 = arith.sitofp %147 : vector<128x1xi32> to vector<128x1xf32>
    %cst_53 = arith.constant 0.000000e+00 : f32
    %149 = vector.shape_cast %148 : vector<128x1xf32> to vector<128x1xf32>
    %150 = vector.broadcast %149 : vector<128x1xf32> to vector<128x128xf32>
    %151 = vector.broadcast %cst_53 : f32 to vector<128x128xf32>
    %152 = arith.select %86, %150, %151 : vector<128x128xi1>, vector<128x128xf32>
    %cst_54 = arith.constant dense<0.000000e+00> : vector<128xf32>
    %153 = vector.multi_reduction <add>, %152, %cst_54 [0] : vector<128x128xf32> to vector<128xf32>
    %154 = vector.shape_cast %153 : vector<128xf32> to vector<1x128xf32>
    %155 = vector.broadcast %136 : f32 to vector<1x128xf32>
    %156 = vector.broadcast %140 : f32 to vector<1x128xf32>
    %157 = tpu.concatenate %154, %155, %156 in 1 : vector<1x128xf32>, vector<1x128xf32>, vector<1x128xf32> -> vector<1x384xf32>
    %158 = vector.shape_cast %157 : vector<1x384xf32> to vector<1x384xf32>
    %159 = vector.broadcast %158 : vector<1x384xf32> to vector<8x384xf32>
    %c0_55 = arith.constant 0 : index
    %c0_56 = arith.constant 0 : index
    %160 = vector.load %arg7[%c0_55, %c0_56] : memref<8x384xf32, #tpu.memory_space<vmem>>, vector<8x384xf32>
    tpu.vector_store %arg7[%c0_55, %c0_56], %159 {strides = array<i32>} : memref<8x384xf32, #tpu.memory_space<vmem>>, vector<8x384xf32>,
    return
  }
  func.func @transform_0(%arg0: i32) -> (i32, i32) {
    %c0_i32 = arith.constant 0 : i32
    %c0_i32_0 = arith.constant 0 : i32
    return %arg0, %c0_i32 : i32, i32
  }
  func.func @transform_1(%arg0: i32) -> (i32, i32) {
    %c0_i32 = arith.constant 0 : i32
    %c0_i32_0 = arith.constant 0 : i32
    %c0_i32_1 = arith.constant 0 : i32
    return %c0_i32, %c0_i32_0 : i32, i32
  }
  func.func @transform_2(%arg0: i32) -> (i32, i32, i32) {
    %c0_i32 = arith.constant 0 : i32
    %c0_i32_0 = arith.constant 0 : i32
    %c0_i32_1 = arith.constant 0 : i32
    %c0_i32_2 = arith.constant 0 : i32
    return %c0_i32, %c0_i32_0, %c0_i32_1 : i32, i32, i32
  }
  func.func @transform_3(%arg0: i32) -> (i32, i32) {
    %c0_i32 = arith.constant 0 : i32
    %c0_i32_0 = arith.constant 0 : i32
    %c0_i32_1 = arith.constant 0 : i32
    return %c0_i32, %c0_i32_0 : i32, i32
  }
  func.func @transform_4(%arg0: i32) -> (i32, i32) {
    %c0_i32 = arith.constant 0 : i32
    %c0_i32_0 = arith.constant 0 : i32
    return %arg0, %c0_i32 : i32, i32
  }
  func.func @transform_5(%arg0: i32) -> (i32, i32) {
    %c0_i32 = arith.constant 0 : i32
    %c0_i32_0 = arith.constant 0 : i32
    return %arg0, %c0_i32 : i32, i32
  }
  func.func @transform_6(%arg0: i32) -> (i32, i32) {
    %c0_i32 = arith.constant 0 : i32
    %c0_i32_0 = arith.constant 0 : i32
    return %arg0, %c0_i32 : i32, i32
  }
}

</mosaic_0001>

<llo_original>
// kernel: simple_pronet_vae_forward.1
$region0: #{simple_pronet_vae_forward.1}
  #allocation0 [shape = 'u32[]', space=smem, size = 0x4, offset = 0x4, fixed_abs, tag = 'smem constant byte address 0x4 - core index']
  #allocation1 [shape = 'u32[72,128]{1,0:T(1,128)}', space=vmem, size = 0x9000, scoped, tag = 'internal scratch']
  %s0 = inlined_call_operand.vmem [shape: f32[128,8], index: 0, kind: input, shape index: {}]
  %s1 = inlined_call_operand.vmem [shape: f32[8,128], index: 1, kind: input, shape index: {}]
  %s2 = inlined_call_operand.vmem [shape: bf16[10,128,128], index: 2, kind: input, shape index: {}]
  %s3 = inlined_call_operand.vmem [shape: f32[9,128], index: 3, kind: input, shape index: {}]
  %s4 = inlined_call_operand.vmem [shape: f32[128,128], index: 4, kind: output, shape index: {0}]
  %s5 = inlined_call_operand.vmem [shape: f32[128,8], index: 5, kind: output, shape index: {1}]
  %s6 = inlined_call_operand.vmem [shape: f32[8,384], index: 6, kind: output, shape index: {2}]
  %7 = xla_tuple %s4, %s5, %s6
  %s8 = sld [smem:[#allocation0]]
  $region42: #{simple_pronet_vae_forward.1} parent=0
    _
  %s10 = ssub.s32 1, %s8
  %s11 = scalar_select 0, %s10, %s8
  // Predicated region
  $region2: #{simple_pronet_vae_forward.1} parent=0 // pred_check
    _
  $region3: #{simple_pronet_vae_forward.1} parent=0 // pred_check_branch
    %13 = sbr.rel (0) target = $region5
  $region4: #{simple_pronet_vae_forward.1} parent=0 // pred_region
    _
  $region5: #{simple_pronet_vae_forward.1} parent=0 // pred_fallthru
    _
  // Predicated region
  $region6: #{simple_pronet_vae_forward.1} parent=0 // pred_check
    _
  $region7: #{simple_pronet_vae_forward.1} parent=0 // pred_check_branch
    %15 = sbr.rel (0) target = $region9
  $region8: #{simple_pronet_vae_forward.1} parent=0 // pred_region
    _
  $region9: #{simple_pronet_vae_forward.1} parent=0 // pred_fallthru
    _
  // Predicated region
  $region10: #{simple_pronet_vae_forward.1} parent=0 // pred_check
    _
  $region11: #{simple_pronet_vae_forward.1} parent=0 // pred_check_branch
    %17 = sbr.rel (0) target = $region13
  $region12: #{simple_pronet_vae_forward.1} parent=0 // pred_region
    _
  $region13: #{simple_pronet_vae_forward.1} parent=0 // pred_fallthru
    _
  // Predicated region
  $region14: #{simple_pronet_vae_forward.1} parent=0 // pred_check
    _
  $region15: #{simple_pronet_vae_forward.1} parent=0 // pred_check_branch
    %19 = sbr.rel (0) target = $region17
  $region16: #{simple_pronet_vae_forward.1} parent=0 // pred_region
    _
  $region17: #{simple_pronet_vae_forward.1} parent=0 // pred_fallthru
    _
  %v20 = vld [vmem:[%s0] sm:$0xff]
  %v21 = vld [vmem:[%s0 + $0x8] sm:$0xff]
  %v22 = vld [vmem:[%s0 + $0x10] sm:$0xff]
  %v23 = vld [vmem:[%s0 + $0x18] sm:$0xff]
  %v24 = vld [vmem:[%s0 + $0x20] sm:$0xff]
  %v25 = vld [vmem:[%s0 + $0x28] sm:$0xff]
  %v26 = vld [vmem:[%s0 + $0x30] sm:$0xff]
  %v27 = vld [vmem:[%s0 + $0x38] sm:$0xff]
  %v28 = vld [vmem:[%s0 + $0x40] sm:$0xff]
  %v29 = vld [vmem:[%s0 + $0x48] sm:$0xff]
  %v30 = vld [vmem:[%s0 + $0x50] sm:$0xff]
  %v31 = vld [vmem:[%s0 + $0x58] sm:$0xff]
  %v32 = vld [vmem:[%s0 + $0x60] sm:$0xff]
  %v33 = vld [vmem:[%s0 + $0x68] sm:$0xff]
  %v34 = vld [vmem:[%s0 + $0x70] sm:$0xff]
  %v35 = vld [vmem:[%s0 + $0x78] sm:$0xff]
  %v36 = vld [vmem:[%s1] sm:$0xff]
  %v37 = vld [vmem:[%s3] sm:$0xff]
  %v38 = vld [vmem:[%s3 + $0x8] sm:$0x1]
  %40 = vset.pattern.permute.xlu0 0
  %41 = vperm.xlu0 %40, %v20
  %v42 = vpop.permute.xlu0 %41
  %45 = vset.pattern.permute.xlu0 0
  %46 = vperm.xlu0 %45, %v21
  %v47 = vpop.permute.xlu0 %46
  %50 = vset.pattern.permute.xlu0 0
  %51 = vperm.xlu0 %50, %v22
  %v52 = vpop.permute.xlu0 %51
  %55 = vset.pattern.permute.xlu0 0
  %56 = vperm.xlu0 %55, %v23
  %v57 = vpop.permute.xlu0 %56
  %60 = vset.pattern.permute.xlu0 0
  %61 = vperm.xlu0 %60, %v24
  %v62 = vpop.permute.xlu0 %61
  %65 = vset.pattern.permute.xlu0 0
  %66 = vperm.xlu0 %65, %v25
  %v67 = vpop.permute.xlu0 %66
  %70 = vset.pattern.permute.xlu0 0
  %71 = vperm.xlu0 %70, %v26
  %v72 = vpop.permute.xlu0 %71
  %75 = vset.pattern.permute.xlu0 0
  %76 = vperm.xlu0 %75, %v27
  %v77 = vpop.permute.xlu0 %76
  %80 = vset.pattern.permute.xlu0 0
  %81 = vperm.xlu0 %80, %v28
  %v82 = vpop.permute.xlu0 %81
  %85 = vset.pattern.permute.xlu0 0
  %86 = vperm.xlu0 %85, %v29
  %v87 = vpop.permute.xlu0 %86
  %90 = vset.pattern.permute.xlu0 0
  %91 = vperm.xlu0 %90, %v30
  %v92 = vpop.permute.xlu0 %91
  %95 = vset.pattern.permute.xlu0 0
  %96 = vperm.xlu0 %95, %v31
  %v97 = vpop.permute.xlu0 %96
  %100 = vset.pattern.permute.xlu0 0
  %101 = vperm.xlu0 %100, %v32
  %v102 = vpop.permute.xlu0 %101
  %105 = vset.pattern.permute.xlu0 0
  %106 = vperm.xlu0 %105, %v33
  %v107 = vpop.permute.xlu0 %106
  %110 = vset.pattern.permute.xlu0 0
  %111 = vperm.xlu0 %110, %v34
  %v112 = vpop.permute.xlu0 %111
  %115 = vset.pattern.permute.xlu0 0
  %116 = vperm.xlu0 %115, %v35
  %v117 = vpop.permute.xlu0 %116
  %v119 = vperm.slane %v36, 0
  %v120 = vmul.f32 %v42, %v119
  %v121 = vmul.f32 %v47, %v119
  %v122 = vmul.f32 %v52, %v119
  %v123 = vmul.f32 %v57, %v119
  %v124 = vmul.f32 %v62, %v119
  %v125 = vmul.f32 %v67, %v119
  %v126 = vmul.f32 %v72, %v119
  %v127 = vmul.f32 %v77, %v119
  %v128 = vmul.f32 %v82, %v119
  %v129 = vmul.f32 %v87, %v119
  %v130 = vmul.f32 %v92, %v119
  %v131 = vmul.f32 %v97, %v119
  %v132 = vmul.f32 %v102, %v119
  %v133 = vmul.f32 %v107, %v119
  %v134 = vmul.f32 %v112, %v119
  %v135 = vmul.f32 %v117, %v119
  %136 = vset.pattern.permute.xlu0 1
  %137 = vperm.xlu0 %136, %v20
  %v138 = vpop.permute.xlu0 %137
  %140 = vset.pattern.permute.xlu0 1
  %141 = vperm.xlu0 %140, %v21
  %v142 = vpop.permute.xlu0 %141
  %144 = vset.pattern.permute.xlu0 1
  %145 = vperm.xlu0 %144, %v22
  %v146 = vpop.permute.xlu0 %145
  %148 = vset.pattern.permute.xlu0 1
  %149 = vperm.xlu0 %148, %v23
  %v150 = vpop.permute.xlu0 %149
  %152 = vset.pattern.permute.xlu0 1
  %153 = vperm.xlu0 %152, %v24
  %v154 = vpop.permute.xlu0 %153
  %156 = vset.pattern.permute.xlu0 1
  %157 = vperm.xlu0 %156, %v25
  %v158 = vpop.permute.xlu0 %157
  %160 = vset.pattern.permute.xlu0 1
  %161 = vperm.xlu0 %160, %v26
  %v162 = vpop.permute.xlu0 %161
  %164 = vset.pattern.permute.xlu0 1
  %165 = vperm.xlu0 %164, %v27
  %v166 = vpop.permute.xlu0 %165
  %168 = vset.pattern.permute.xlu0 1
  %169 = vperm.xlu0 %168, %v28
  %v170 = vpop.permute.xlu0 %169
  %172 = vset.pattern.permute.xlu0 1
  %173 = vperm.xlu0 %172, %v29
  %v174 = vpop.permute.xlu0 %173
  %176 = vset.pattern.permute.xlu0 1
  %177 = vperm.xlu0 %176, %v30
  %v178 = vpop.permute.xlu0 %177
  %180 = vset.pattern.permute.xlu0 1
  %181 = vperm.xlu0 %180, %v31
  %v182 = vpop.permute.xlu0 %181
  %184 = vset.pattern.permute.xlu0 1
  %185 = vperm.xlu0 %184, %v32
  %v186 = vpop.permute.xlu0 %185
  %188 = vset.pattern.permute.xlu0 1
  %189 = vperm.xlu0 %188, %v33
  %v190 = vpop.permute.xlu0 %189
  %192 = vset.pattern.permute.xlu0 1
  %193 = vperm.xlu0 %192, %v34
  %v194 = vpop.permute.xlu0 %193
  %196 = vset.pattern.permute.xlu0 1
  %197 = vperm.xlu0 %196, %v35
  %v198 = vpop.permute.xlu0 %197
  %v200 = vperm.slane %v36, 1
  %v201 = vmul.f32 %v138, %v200
  %v202 = vmul.f32 %v142, %v200
  %v203 = vmul.f32 %v146, %v200
  %v204 = vmul.f32 %v150, %v200
  %v205 = vmul.f32 %v154, %v200
  %v206 = vmul.f32 %v158, %v200
  %v207 = vmul.f32 %v162, %v200
  %v208 = vmul.f32 %v166, %v200
  %v209 = vmul.f32 %v170, %v200
  %v210 = vmul.f32 %v174, %v200
  %v211 = vmul.f32 %v178, %v200
  %v212 = vmul.f32 %v182, %v200
  %v213 = vmul.f32 %v186, %v200
  %v214 = vmul.f32 %v190, %v200
  %v215 = vmul.f32 %v194, %v200
  %v216 = vmul.f32 %v198, %v200
  %v217 = vadd.f32 %v120, %v201
  %v218 = vadd.f32 %v121, %v202
  %v219 = vadd.f32 %v122, %v203
  %v220 = vadd.f32 %v123, %v204
  %v221 = vadd.f32 %v124, %v205
  %v222 = vadd.f32 %v125, %v206
  %v223 = vadd.f32 %v126, %v207
  %v224 = vadd.f32 %v127, %v208
  %v225 = vadd.f32 %v128, %v209
  %v226 = vadd.f32 %v129, %v210
  %v227 = vadd.f32 %v130, %v211
  %v228 = vadd.f32 %v131, %v212
  %v229 = vadd.f32 %v132, %v213
  %v230 = vadd.f32 %v133, %v214
  %v231 = vadd.f32 %v134, %v215
  %v232 = vadd.f32 %v135, %v216
  %233 = vset.pattern.permute.xlu0 2
  %234 = vperm.xlu0 %233, %v20
  %v235 = vpop.permute.xlu0 %234
  %237 = vset.pattern.permute.xlu0 2
  %238 = vperm.xlu0 %237, %v21
  %v239 = vpop.permute.xlu0 %238
  %241 = vset.pattern.permute.xlu0 2
  %242 = vperm.xlu0 %241, %v22
  %v243 = vpop.permute.xlu0 %242
  %245 = vset.pattern.permute.xlu0 2
  %246 = vperm.xlu0 %245, %v23
  %v247 = vpop.permute.xlu0 %246
  %249 = vset.pattern.permute.xlu0 2
  %250 = vperm.xlu0 %249, %v24
  %v251 = vpop.permute.xlu0 %250
  %253 = vset.pattern.permute.xlu0 2
  %254 = vperm.xlu0 %253, %v25
  %v255 = vpop.permute.xlu0 %254
  %257 = vset.pattern.permute.xlu0 2
  %258 = vperm.xlu0 %257, %v26
  %v259 = vpop.permute.xlu0 %258
  %261 = vset.pattern.permute.xlu0 2
  %262 = vperm.xlu0 %261, %v27
  %v263 = vpop.permute.xlu0 %262
  %265 = vset.pattern.permute.xlu0 2
  %266 = vperm.xlu0 %265, %v28
  %v267 = vpop.permute.xlu0 %266
  %269 = vset.pattern.permute.xlu0 2
  %270 = vperm.xlu0 %269, %v29
  %v271 = vpop.permute.xlu0 %270
  %273 = vset.pattern.permute.xlu0 2
  %274 = vperm.xlu0 %273, %v30
  %v275 = vpop.permute.xlu0 %274
  %277 = vset.pattern.permute.xlu0 2
  %278 = vperm.xlu0 %277, %v31
  %v279 = vpop.permute.xlu0 %278
  %281 = vset.pattern.permute.xlu0 2
  %282 = vperm.xlu0 %281, %v32
  %v283 = vpop.permute.xlu0 %282
  %285 = vset.pattern.permute.xlu0 2
  %286 = vperm.xlu0 %285, %v33
  %v287 = vpop.permute.xlu0 %286
  %289 = vset.pattern.permute.xlu0 2
  %290 = vperm.xlu0 %289, %v34
  %v291 = vpop.permute.xlu0 %290
  %293 = vset.pattern.permute.xlu0 2
  %294 = vperm.xlu0 %293, %v35
  %v295 = vpop.permute.xlu0 %294
  %v297 = vperm.slane %v36, 2
  %v298 = vmul.f32 %v235, %v297
  %v299 = vmul.f32 %v239, %v297
  %v300 = vmul.f32 %v243, %v297
  %v301 = vmul.f32 %v247, %v297
  %v302 = vmul.f32 %v251, %v297
  %v303 = vmul.f32 %v255, %v297
  %v304 = vmul.f32 %v259, %v297
  %v305 = vmul.f32 %v263, %v297
  %v306 = vmul.f32 %v267, %v297
  %v307 = vmul.f32 %v271, %v297
  %v308 = vmul.f32 %v275, %v297
  %v309 = vmul.f32 %v279, %v297
  %v310 = vmul.f32 %v283, %v297
  %v311 = vmul.f32 %v287, %v297
  %v312 = vmul.f32 %v291, %v297
  %v313 = vmul.f32 %v295, %v297
  %v314 = vadd.f32 %v217, %v298
  %v315 = vadd.f32 %v218, %v299
  %v316 = vadd.f32 %v219, %v300
  %v317 = vadd.f32 %v220, %v301
  %v318 = vadd.f32 %v221, %v302
  %v319 = vadd.f32 %v222, %v303
  %v320 = vadd.f32 %v223, %v304
  %v321 = vadd.f32 %v224, %v305
  %v322 = vadd.f32 %v225, %v306
  %v323 = vadd.f32 %v226, %v307
  %v324 = vadd.f32 %v227, %v308
  %v325 = vadd.f32 %v228, %v309
  %v326 = vadd.f32 %v229, %v310
  %v327 = vadd.f32 %v230, %v311
  %v328 = vadd.f32 %v231, %v312
  %v329 = vadd.f32 %v232, %v313
  %v330 = vperm.slane %v37, 0
  %v331 = vadd.f32 %v314, %v330
  %v332 = vadd.f32 %v315, %v330
  %v333 = vadd.f32 %v316, %v330
  %v334 = vadd.f32 %v317, %v330
  %v335 = vadd.f32 %v318, %v330
  %v336 = vadd.f32 %v319, %v330
  %v337 = vadd.f32 %v320, %v330
  %v338 = vadd.f32 %v321, %v330
  %v339 = vadd.f32 %v322, %v330
  %v340 = vadd.f32 %v323, %v330
  %v341 = vadd.f32 %v324, %v330
  %v342 = vadd.f32 %v325, %v330
  %v343 = vadd.f32 %v326, %v330
  %v344 = vadd.f32 %v327, %v330
  %v345 = vadd.f32 %v328, %v330
  %v346 = vadd.f32 %v329, %v330
  %v347 = vmax.f32 %v331, 0.0
  %v348 = vmax.f32 %v332, 0.0
  %v349 = vmax.f32 %v333, 0.0
  %v350 = vmax.f32 %v334, 0.0
  %v351 = vmax.f32 %v335, 0.0
  %v352 = vmax.f32 %v336, 0.0
  %v353 = vmax.f32 %v337, 0.0
  %v354 = vmax.f32 %v338, 0.0
  %v355 = vmax.f32 %v339, 0.0
  %v356 = vmax.f32 %v340, 0.0
  %v357 = vmax.f32 %v341, 0.0
  %v358 = vmax.f32 %v342, 0.0
  %v359 = vmax.f32 %v343, 0.0
  %v360 = vmax.f32 %v344, 0.0
  %v361 = vmax.f32 %v345, 0.0
  %v362 = vmax.f32 %v346, 0.0
  %v363 = vpack.c.bf16 %v348, %v347
  %v364 = vpack.c.bf16 %v350, %v349
  %v365 = vpack.c.bf16 %v352, %v351
  %v366 = vpack.c.bf16 %v354, %v353
  %v367 = vpack.c.bf16 %v356, %v355
  %v368 = vpack.c.bf16 %v358, %v357
  %v369 = vpack.c.bf16 %v360, %v359
  %v370 = vpack.c.bf16 %v362, %v361
  %v371 = vld [vmem:[%s2] sm:$0xf]
  %v372 = vld [vmem:[%s2 + $0x4] sm:$0xf]
  %v373 = vld [vmem:[%s2 + $0x8] sm:$0xf]
  %v374 = vld [vmem:[%s2 + $0xc] sm:$0xf]
  %v375 = vld [vmem:[%s2 + $0x10] sm:$0xf]
  %v376 = vld [vmem:[%s2 + $0x14] sm:$0xf]
  %v377 = vld [vmem:[%s2 + $0x18] sm:$0xf]
  %v378 = vld [vmem:[%s2 + $0x1c] sm:$0xf]
  %v379 = vld [vmem:[%s2 + $0x20] sm:$0xf]
  %v380 = vld [vmem:[%s2 + $0x24] sm:$0xf]
  %v381 = vld [vmem:[%s2 + $0x28] sm:$0xf]
  %v382 = vld [vmem:[%s2 + $0x2c] sm:$0xf]
  %v383 = vld [vmem:[%s2 + $0x30] sm:$0xf]
  %v384 = vld [vmem:[%s2 + $0x34] sm:$0xf]
  %v385 = vld [vmem:[%s2 + $0x38] sm:$0xf]
  %v386 = vld [vmem:[%s2 + $0x3c] sm:$0xf]
  %v387 = vperm.slane %v37, 1
  %v404 = vunpack.c.l.b16 %v371
  %v405 = vunpack.c.l.b16 %v372
  %v406 = vunpack.c.l.b16 %v373
  %v407 = vunpack.c.l.b16 %v374
  %v408 = vunpack.c.l.b16 %v375
  %v409 = vunpack.c.l.b16 %v376
  %v410 = vunpack.c.l.b16 %v377
  %v411 = vunpack.c.l.b16 %v378
  %v412 = vunpack.c.l.b16 %v379
  %v413 = vunpack.c.l.b16 %v380
  %v414 = vunpack.c.l.b16 %v381
  %v415 = vunpack.c.l.b16 %v382
  %v416 = vunpack.c.l.b16 %v383
  %v417 = vunpack.c.l.b16 %v384
  %v418 = vunpack.c.l.b16 %v385
  %v419 = vunpack.c.l.b16 %v386
  %v420 = vpack.c.b16 %v405, %v404
  %v421 = vpack.c.b16 %v407, %v406
  %v422 = vpack.c.b16 %v409, %v408
  %v423 = vpack.c.b16 %v411, %v410
  %v424 = vpack.c.b16 %v413, %v412
  %v425 = vpack.c.b16 %v415, %v414
  %v426 = vpack.c.b16 %v417, %v416
  %v427 = vpack.c.b16 %v419, %v418
  %436 = vmatpush.bf16.msra.mxu0 %v427
  %437 = vmatpush.bf16.msra.mxu0 %v426
  %438 = vmatpush.bf16.msra.mxu0 %v425
  %439 = vmatpush.bf16.msra.mxu0 %v424
  %440 = vmatpush.bf16.msra.mxu0 %v423
  %441 = vmatpush.bf16.msra.mxu0 %v422
  %442 = vmatpush.bf16.msra.mxu0 %v421
  %443 = vmatpush.bf16.msra.mxu0 %v420
  %444 = vmatmul.bf16.gmra.mxu0 %v363
  %v445 = vpop.f32.mrf.mxu0
  %v446 = vadd.f32 %v387, %v445
  %v447 = vpop.f32.mrf.mxu0
  %v448 = vadd.f32 %v387, %v447
  %449 = vmatmul.bf16.gmra.mxu0 %v364
  %v450 = vpop.f32.mrf.mxu0
  %v451 = vadd.f32 %v387, %v450
  %v452 = vpop.f32.mrf.mxu0
  %v453 = vadd.f32 %v387, %v452
  %454 = vmatmul.bf16.gmra.mxu0 %v365
  %v455 = vpop.f32.mrf.mxu0
  %v456 = vadd.f32 %v387, %v455
  %v457 = vpop.f32.mrf.mxu0
  %v458 = vadd.f32 %v387, %v457
  %459 = vmatmul.bf16.gmra.mxu0 %v366
  %v460 = vpop.f32.mrf.mxu0
  %v461 = vadd.f32 %v387, %v460
  %v462 = vpop.f32.mrf.mxu0
  %v463 = vadd.f32 %v387, %v462
  %464 = vmatmul.bf16.gmra.mxu0 %v367
  %v465 = vpop.f32.mrf.mxu0
  %v466 = vadd.f32 %v387, %v465
  %v467 = vpop.f32.mrf.mxu0
  %v468 = vadd.f32 %v387, %v467
  %469 = vmatmul.bf16.gmra.mxu0 %v368
  %v470 = vpop.f32.mrf.mxu0
  %v471 = vadd.f32 %v387, %v470
  %v472 = vpop.f32.mrf.mxu0
  %v473 = vadd.f32 %v387, %v472
  %474 = vmatmul.bf16.gmra.mxu0 %v369
  %v475 = vpop.f32.mrf.mxu0
  %v476 = vadd.f32 %v387, %v475
  %v477 = vpop.f32.mrf.mxu0
  %v478 = vadd.f32 %v387, %v477
  %479 = vmatmul.bf16.gmra.mxu0 %v370
  %v480 = vpop.f32.mrf.mxu0
  %v481 = vadd.f32 %v387, %v480
  %v482 = vpop.f32.mrf.mxu0
  %v483 = vadd.f32 %v387, %v482
  %484 = vdwg.mxu0
  %v485 = vmax.f32 %v446, 0.0
  %v486 = vmax.f32 %v448, 0.0
  %v487 = vmax.f32 %v451, 0.0
  %v488 = vmax.f32 %v453, 0.0
  %v489 = vmax.f32 %v456, 0.0
  %v490 = vmax.f32 %v458, 0.0
  %v491 = vmax.f32 %v461, 0.0
  %v492 = vmax.f32 %v463, 0.0
  %v493 = vmax.f32 %v466, 0.0
  %v494 = vmax.f32 %v468, 0.0
  %v495 = vmax.f32 %v471, 0.0
  %v496 = vmax.f32 %v473, 0.0
  %v497 = vmax.f32 %v476, 0.0
  %v498 = vmax.f32 %v478, 0.0
  %v499 = vmax.f32 %v481, 0.0
  %v500 = vmax.f32 %v483, 0.0
  %v501 = vpack.c.bf16 %v486, %v485
  %v502 = vpack.c.bf16 %v488, %v487
  %v503 = vpack.c.bf16 %v490, %v489
  %v504 = vpack.c.bf16 %v492, %v491
  %v505 = vpack.c.bf16 %v494, %v493
  %v506 = vpack.c.bf16 %v496, %v495
  %v507 = vpack.c.bf16 %v498, %v497
  %v508 = vpack.c.bf16 %v500, %v499
  %s509 = scalar_lea.vmem %s2, 64
  %v510 = vld [vmem:[%s509] sm:$0xf]
  %v511 = vld [vmem:[%s509 + $0x4] sm:$0xf]
  %v512 = vld [vmem:[%s509 + $0x8] sm:$0xf]
  %v513 = vld [vmem:[%s509 + $0xc] sm:$0xf]
  %v514 = vld [vmem:[%s509 + $0x10] sm:$0xf]
  %v515 = vld [vmem:[%s509 + $0x14] sm:$0xf]
  %v516 = vld [vmem:[%s509 + $0x18] sm:$0xf]
  %v517 = vld [vmem:[%s509 + $0x1c] sm:$0xf]
  %v518 = vld [vmem:[%s509 + $0x20] sm:$0xf]
  %v519 = vld [vmem:[%s509 + $0x24] sm:$0xf]
  %v520 = vld [vmem:[%s509 + $0x28] sm:$0xf]
  %v521 = vld [vmem:[%s509 + $0x2c] sm:$0xf]
  %v522 = vld [vmem:[%s509 + $0x30] sm:$0xf]
  %v523 = vld [vmem:[%s509 + $0x34] sm:$0xf]
  %v524 = vld [vmem:[%s509 + $0x38] sm:$0xf]
  %v525 = vld [vmem:[%s509 + $0x3c] sm:$0xf]
  %v526 = vperm.slane %v37, 2
  %v543 = vunpack.c.l.b16 %v510
  %v544 = vunpack.c.l.b16 %v511
  %v545 = vunpack.c.l.b16 %v512
  %v546 = vunpack.c.l.b16 %v513
  %v547 = vunpack.c.l.b16 %v514
  %v548 = vunpack.c.l.b16 %v515
  %v549 = vunpack.c.l.b16 %v516
  %v550 = vunpack.c.l.b16 %v517
  %v551 = vunpack.c.l.b16 %v518
  %v552 = vunpack.c.l.b16 %v519
  %v553 = vunpack.c.l.b16 %v520
  %v554 = vunpack.c.l.b16 %v521
  %v555 = vunpack.c.l.b16 %v522
  %v556 = vunpack.c.l.b16 %v523
  %v557 = vunpack.c.l.b16 %v524
  %v558 = vunpack.c.l.b16 %v525
  %v559 = vpack.c.b16 %v544, %v543
  %v560 = vpack.c.b16 %v546, %v545
  %v561 = vpack.c.b16 %v548, %v547
  %v562 = vpack.c.b16 %v550, %v549
  %v563 = vpack.c.b16 %v552, %v551
  %v564 = vpack.c.b16 %v554, %v553
  %v565 = vpack.c.b16 %v556, %v555
  %v566 = vpack.c.b16 %v558, %v557
  %575 = vmatpush.bf16.msra.mxu0 %v566
  %576 = vmatpush.bf16.msra.mxu0 %v565
  %577 = vmatpush.bf16.msra.mxu0 %v564
  %578 = vmatpush.bf16.msra.mxu0 %v563
  %579 = vmatpush.bf16.msra.mxu0 %v562
  %580 = vmatpush.bf16.msra.mxu0 %v561
  %581 = vmatpush.bf16.msra.mxu0 %v560
  %582 = vmatpush.bf16.msra.mxu0 %v559
  %583 = vmatmul.bf16.gmra.mxu0 %v501
  %v584 = vpop.f32.mrf.mxu0
  %v585 = vadd.f32 %v526, %v584
  %v586 = vpop.f32.mrf.mxu0
  %v587 = vadd.f32 %v526, %v586
  %588 = vmatmul.bf16.gmra.mxu0 %v502
  %v589 = vpop.f32.mrf.mxu0
  %v590 = vadd.f32 %v526, %v589
  %v591 = vpop.f32.mrf.mxu0
  %v592 = vadd.f32 %v526, %v591
  %593 = vmatmul.bf16.gmra.mxu0 %v503
  %v594 = vpop.f32.mrf.mxu0
  %v595 = vadd.f32 %v526, %v594
  %v596 = vpop.f32.mrf.mxu0
  %v597 = vadd.f32 %v526, %v596
  %598 = vmatmul.bf16.gmra.mxu0 %v504
  %v599 = vpop.f32.mrf.mxu0
  %v600 = vadd.f32 %v526, %v599
  %v601 = vpop.f32.mrf.mxu0
  %v602 = vadd.f32 %v526, %v601
  %603 = vmatmul.bf16.gmra.mxu0 %v505
  %v604 = vpop.f32.mrf.mxu0
  %v605 = vadd.f32 %v526, %v604
  %v606 = vpop.f32.mrf.mxu0
  %v607 = vadd.f32 %v526, %v606
  %608 = vmatmul.bf16.gmra.mxu0 %v506
  %v609 = vpop.f32.mrf.mxu0
  %v610 = vadd.f32 %v526, %v609
  %v611 = vpop.f32.mrf.mxu0
  %v612 = vadd.f32 %v526, %v611
  %613 = vmatmul.bf16.gmra.mxu0 %v507
  %v614 = vpop.f32.mrf.mxu0
  %v615 = vadd.f32 %v526, %v614
  %v616 = vpop.f32.mrf.mxu0
  %v617 = vadd.f32 %v526, %v616
  %618 = vmatmul.bf16.gmra.mxu0 %v508
  %v619 = vpop.f32.mrf.mxu0
  %v620 = vadd.f32 %v526, %v619
  %v621 = vpop.f32.mrf.mxu0
  %v622 = vadd.f32 %v526, %v621
  %623 = vdwg.mxu0
  %v624 = vmax.f32 %v585, 0.0
  %v625 = vmax.f32 %v587, 0.0
  %v626 = vmax.f32 %v590, 0.0
  %v627 = vmax.f32 %v592, 0.0
  %v628 = vmax.f32 %v595, 0.0
  %v629 = vmax.f32 %v597, 0.0
  %v630 = vmax.f32 %v600, 0.0
  %v631 = vmax.f32 %v602, 0.0
  %v632 = vmax.f32 %v605, 0.0
  %v633 = vmax.f32 %v607, 0.0
  %v634 = vmax.f32 %v610, 0.0
  %v635 = vmax.f32 %v612, 0.0
  %v636 = vmax.f32 %v615, 0.0
  %v637 = vmax.f32 %v617, 0.0
  %v638 = vmax.f32 %v620, 0.0
  %v639 = vmax.f32 %v622, 0.0
  %v640 = vpack.c.bf16 %v625, %v624
  %v641 = vpack.c.bf16 %v627, %v626
  %v642 = vpack.c.bf16 %v629, %v628
  %v643 = vpack.c.bf16 %v631, %v630
  %v644 = vpack.c.bf16 %v633, %v632
  %v645 = vpack.c.bf16 %v635, %v634
  %v646 = vpack.c.bf16 %v637, %v636
  %v647 = vpack.c.bf16 %v639, %v638
  %s648 = scalar_lea.vmem %s2, 128
  %v649 = vld [vmem:[%s648] sm:$0xf]
  %v650 = vld [vmem:[%s648 + $0x4] sm:$0xf]
  %v651 = vld [vmem:[%s648 + $0x8] sm:$0xf]
  %v652 = vld [vmem:[%s648 + $0xc] sm:$0xf]
  %v653 = vld [vmem:[%s648 + $0x10] sm:$0xf]
  %v654 = vld [vmem:[%s648 + $0x14] sm:$0xf]
  %v655 = vld [vmem:[%s648 + $0x18] sm:$0xf]
  %v656 = vld [vmem:[%s648 + $0x1c] sm:$0xf]
  %v657 = vld [vmem:[%s648 + $0x20] sm:$0xf]
  %v658 = vld [vmem:[%s648 + $0x24] sm:$0xf]
  %v659 = vld [vmem:[%s648 + $0x28] sm:$0xf]
  %v660 = vld [vmem:[%s648 + $0x2c] sm:$0xf]
  %v661 = vld [vmem:[%s648 + $0x30] sm:$0xf]
  %v662 = vld [vmem:[%s648 + $0x34] sm:$0xf]
  %v663 = vld [vmem:[%s648 + $0x38] sm:$0xf]
  %v664 = vld [vmem:[%s648 + $0x3c] sm:$0xf]
  %v665 = vperm.slane %v37, 3
  %v682 = vunpack.c.l.b16 %v649
  %v683 = vunpack.c.l.b16 %v650
  %v684 = vunpack.c.l.b16 %v651
  %v685 = vunpack.c.l.b16 %v652
  %v686 = vunpack.c.l.b16 %v653
  %v687 = vunpack.c.l.b16 %v654
  %v688 = vunpack.c.l.b16 %v655
  %v689 = vunpack.c.l.b16 %v656
  %v690 = vunpack.c.l.b16 %v657
  %v691 = vunpack.c.l.b16 %v658
  %v692 = vunpack.c.l.b16 %v659
  %v693 = vunpack.c.l.b16 %v660
  %v694 = vunpack.c.l.b16 %v661
  %v695 = vunpack.c.l.b16 %v662
  %v696 = vunpack.c.l.b16 %v663
  %v697 = vunpack.c.l.b16 %v664
  %v698 = vpack.c.b16 %v683, %v682
  %v699 = vpack.c.b16 %v685, %v684
  %v700 = vpack.c.b16 %v687, %v686
  %v701 = vpack.c.b16 %v689, %v688
  %v702 = vpack.c.b16 %v691, %v690
  %v703 = vpack.c.b16 %v693, %v692
  %v704 = vpack.c.b16 %v695, %v694
  %v705 = vpack.c.b16 %v697, %v696
  %714 = vmatpush.bf16.msra.mxu0 %v705
  %715 = vmatpush.bf16.msra.mxu0 %v704
  %716 = vmatpush.bf16.msra.mxu0 %v703
  %717 = vmatpush.bf16.msra.mxu0 %v702
  %718 = vmatpush.bf16.msra.mxu0 %v701
  %719 = vmatpush.bf16.msra.mxu0 %v700
  %720 = vmatpush.bf16.msra.mxu0 %v699
  %721 = vmatpush.bf16.msra.mxu0 %v698
  %722 = vmatmul.bf16.gmra.mxu0 %v640
  %v723 = vpop.f32.mrf.mxu0
  %v724 = vadd.f32 %v665, %v723
  %v725 = vpop.f32.mrf.mxu0
  %v726 = vadd.f32 %v665, %v725
  %727 = vmatmul.bf16.gmra.mxu0 %v641
  %v728 = vpop.f32.mrf.mxu0
  %v729 = vadd.f32 %v665, %v728
  %v730 = vpop.f32.mrf.mxu0
  %v731 = vadd.f32 %v665, %v730
  %732 = vmatmul.bf16.gmra.mxu0 %v642
  %v733 = vpop.f32.mrf.mxu0
  %v734 = vadd.f32 %v665, %v733
  %v735 = vpop.f32.mrf.mxu0
  %v736 = vadd.f32 %v665, %v735
  %737 = vmatmul.bf16.gmra.mxu0 %v643
  %v738 = vpop.f32.mrf.mxu0
  %v739 = vadd.f32 %v665, %v738
  %v740 = vpop.f32.mrf.mxu0
  %v741 = vadd.f32 %v665, %v740
  %742 = vmatmul.bf16.gmra.mxu0 %v644
  %v743 = vpop.f32.mrf.mxu0
  %v744 = vadd.f32 %v665, %v743
  %v745 = vpop.f32.mrf.mxu0
  %v746 = vadd.f32 %v665, %v745
  %747 = vmatmul.bf16.gmra.mxu0 %v645
  %v748 = vpop.f32.mrf.mxu0
  %v749 = vadd.f32 %v665, %v748
  %v750 = vpop.f32.mrf.mxu0
  %v751 = vadd.f32 %v665, %v750
  %752 = vmatmul.bf16.gmra.mxu0 %v646
  %v753 = vpop.f32.mrf.mxu0
  %v754 = vadd.f32 %v665, %v753
  %v755 = vpop.f32.mrf.mxu0
  %v756 = vadd.f32 %v665, %v755
  %757 = vmatmul.bf16.gmra.mxu0 %v647
  %v758 = vpop.f32.mrf.mxu0
  %v759 = vadd.f32 %v665, %v758
  %v760 = vpop.f32.mrf.mxu0
  %v761 = vadd.f32 %v665, %v760
  %762 = vdwg.mxu0
  %v763 = vmax.f32 %v724, 0.0
  %v764 = vmax.f32 %v726, 0.0
  %v765 = vmax.f32 %v729, 0.0
  %v766 = vmax.f32 %v731, 0.0
  %v767 = vmax.f32 %v734, 0.0
  %v768 = vmax.f32 %v736, 0.0
  %v769 = vmax.f32 %v739, 0.0
  %v770 = vmax.f32 %v741, 0.0
  %v771 = vmax.f32 %v744, 0.0
  %v772 = vmax.f32 %v746, 0.0
  %v773 = vmax.f32 %v749, 0.0
  %v774 = vmax.f32 %v751, 0.0
  %v775 = vmax.f32 %v754, 0.0
  %v776 = vmax.f32 %v756, 0.0
  %v777 = vmax.f32 %v759, 0.0
  %v778 = vmax.f32 %v761, 0.0
  %v779 = vpack.c.bf16 %v764, %v763
  %v780 = vpack.c.bf16 %v766, %v765
  %v781 = vpack.c.bf16 %v768, %v767
  %v782 = vpack.c.bf16 %v770, %v769
  %v783 = vpack.c.bf16 %v772, %v771
  %v784 = vpack.c.bf16 %v774, %v773
  %v785 = vpack.c.bf16 %v776, %v775
  %v786 = vpack.c.bf16 %v778, %v777
  %s787 = scalar_lea.vmem %s2, 192
  %v788 = vld [vmem:[%s787] sm:$0xf]
  %v789 = vld [vmem:[%s787 + $0x4] sm:$0xf]
  %v790 = vld [vmem:[%s787 + $0x8] sm:$0xf]
  %v791 = vld [vmem:[%s787 + $0xc] sm:$0xf]
  %v792 = vld [vmem:[%s787 + $0x10] sm:$0xf]
  %v793 = vld [vmem:[%s787 + $0x14] sm:$0xf]
  %v794 = vld [vmem:[%s787 + $0x18] sm:$0xf]
  %v795 = vld [vmem:[%s787 + $0x1c] sm:$0xf]
  %v796 = vld [vmem:[%s787 + $0x20] sm:$0xf]
  %v797 = vld [vmem:[%s787 + $0x24] sm:$0xf]
  %v798 = vld [vmem:[%s787 + $0x28] sm:$0xf]
  %v799 = vld [vmem:[%s787 + $0x2c] sm:$0xf]
  %v800 = vld [vmem:[%s787 + $0x30] sm:$0xf]
  %v801 = vld [vmem:[%s787 + $0x34] sm:$0xf]
  %v802 = vld [vmem:[%s787 + $0x38] sm:$0xf]
  %v803 = vld [vmem:[%s787 + $0x3c] sm:$0xf]
  %v804 = vperm.slane %v37, 4
  %v821 = vunpack.c.l.b16 %v788
  %v822 = vunpack.c.l.b16 %v789
  %v823 = vunpack.c.l.b16 %v790
  %v824 = vunpack.c.l.b16 %v791
  %v825 = vunpack.c.l.b16 %v792
  %v826 = vunpack.c.l.b16 %v793
  %v827 = vunpack.c.l.b16 %v794
  %v828 = vunpack.c.l.b16 %v795
  %v829 = vunpack.c.l.b16 %v796
  %v830 = vunpack.c.l.b16 %v797
  %v831 = vunpack.c.l.b16 %v798
  %v832 = vunpack.c.l.b16 %v799
  %v833 = vunpack.c.l.b16 %v800
  %v834 = vunpack.c.l.b16 %v801
  %v835 = vunpack.c.l.b16 %v802
  %v836 = vunpack.c.l.b16 %v803
  %v837 = vpack.c.b16 %v822, %v821
  %v838 = vpack.c.b16 %v824, %v823
  %v839 = vpack.c.b16 %v826, %v825
  %v840 = vpack.c.b16 %v828, %v827
  %v841 = vpack.c.b16 %v830, %v829
  %v842 = vpack.c.b16 %v832, %v831
  %v843 = vpack.c.b16 %v834, %v833
  %v844 = vpack.c.b16 %v836, %v835
  %853 = vmatpush.bf16.msra.mxu0 %v844
  %854 = vmatpush.bf16.msra.mxu0 %v843
  %855 = vmatpush.bf16.msra.mxu0 %v842
  %856 = vmatpush.bf16.msra.mxu0 %v841
  %857 = vmatpush.bf16.msra.mxu0 %v840
  %858 = vmatpush.bf16.msra.mxu0 %v839
  %859 = vmatpush.bf16.msra.mxu0 %v838
  %860 = vmatpush.bf16.msra.mxu0 %v837
  %861 = vmatmul.bf16.gmra.mxu0 %v779
  %v862 = vpop.f32.mrf.mxu0
  %v863 = vadd.f32 %v804, %v862
  %v864 = vpop.f32.mrf.mxu0
  %v865 = vadd.f32 %v804, %v864
  %866 = vmatmul.bf16.gmra.mxu0 %v780
  %v867 = vpop.f32.mrf.mxu0
  %v868 = vadd.f32 %v804, %v867
  %v869 = vpop.f32.mrf.mxu0
  %v870 = vadd.f32 %v804, %v869
  %871 = vmatmul.bf16.gmra.mxu0 %v781
  %v872 = vpop.f32.mrf.mxu0
  %v873 = vadd.f32 %v804, %v872
  %v874 = vpop.f32.mrf.mxu0
  %v875 = vadd.f32 %v804, %v874
  %876 = vmatmul.bf16.gmra.mxu0 %v782
  %v877 = vpop.f32.mrf.mxu0
  %v878 = vadd.f32 %v804, %v877
  %v879 = vpop.f32.mrf.mxu0
  %v880 = vadd.f32 %v804, %v879
  %881 = vmatmul.bf16.gmra.mxu0 %v783
  %v882 = vpop.f32.mrf.mxu0
  %v883 = vadd.f32 %v804, %v882
  %v884 = vpop.f32.mrf.mxu0
  %v885 = vadd.f32 %v804, %v884
  %886 = vmatmul.bf16.gmra.mxu0 %v784
  %v887 = vpop.f32.mrf.mxu0
  %v888 = vadd.f32 %v804, %v887
  %v889 = vpop.f32.mrf.mxu0
  %v890 = vadd.f32 %v804, %v889
  %891 = vmatmul.bf16.gmra.mxu0 %v785
  %v892 = vpop.f32.mrf.mxu0
  %v893 = vadd.f32 %v804, %v892
  %v894 = vpop.f32.mrf.mxu0
  %v895 = vadd.f32 %v804, %v894
  %896 = vmatmul.bf16.gmra.mxu0 %v786
  %v897 = vpop.f32.mrf.mxu0
  %v898 = vadd.f32 %v804, %v897
  %v899 = vpop.f32.mrf.mxu0
  %v900 = vadd.f32 %v804, %v899
  %901 = vdwg.mxu0
  %v902 = vmax.f32 %v863, -10.0
  %v903 = vmax.f32 %v865, -10.0
  %v904 = vmax.f32 %v868, -10.0
  %v905 = vmax.f32 %v870, -10.0
  %v906 = vmax.f32 %v873, -10.0
  %v907 = vmax.f32 %v875, -10.0
  %v908 = vmax.f32 %v878, -10.0
  %v909 = vmax.f32 %v880, -10.0
  %v910 = vmax.f32 %v883, -10.0
  %v911 = vmax.f32 %v885, -10.0
  %v912 = vmax.f32 %v888, -10.0
  %v913 = vmax.f32 %v890, -10.0
  %v914 = vmax.f32 %v893, -10.0
  %v915 = vmax.f32 %v895, -10.0
  %v916 = vmax.f32 %v898, -10.0
  %v917 = vmax.f32 %v900, -10.0
  %v918 = vmin.f32 %v902, 10.0
  %v919 = vmin.f32 %v903, 10.0
  %v920 = vmin.f32 %v904, 10.0
  %v921 = vmin.f32 %v905, 10.0
  %v922 = vmin.f32 %v906, 10.0
  %v923 = vmin.f32 %v907, 10.0
  %v924 = vmin.f32 %v908, 10.0
  %v925 = vmin.f32 %v909, 10.0
  %v926 = vmin.f32 %v910, 10.0
  %v927 = vmin.f32 %v911, 10.0
  %v928 = vmin.f32 %v912, 10.0
  %v929 = vmin.f32 %v913, 10.0
  %v930 = vmin.f32 %v914, 10.0
  %v931 = vmin.f32 %v915, 10.0
  %v932 = vmin.f32 %v916, 10.0
  %v933 = vmin.f32 %v917, 10.0
  %934 = vst [vmem:[%s4] sm:$0xff] %v918
  %935 = vst [vmem:[%s4 + $0x8] sm:$0xff] %v919
  %936 = vst [vmem:[%s4 + $0x10] sm:$0xff] %v920
  %937 = vst [vmem:[%s4 + $0x18] sm:$0xff] %v921
  %938 = vst [vmem:[%s4 + $0x20] sm:$0xff] %v922
  %939 = vst [vmem:[%s4 + $0x28] sm:$0xff] %v923
  %940 = vst [vmem:[%s4 + $0x30] sm:$0xff] %v924
  %941 = vst [vmem:[%s4 + $0x38] sm:$0xff] %v925
  %942 = vst [vmem:[%s4 + $0x40] sm:$0xff] %v926
  %943 = vst [vmem:[%s4 + $0x48] sm:$0xff] %v927
  %944 = vst [vmem:[%s4 + $0x50] sm:$0xff] %v928
  %945 = vst [vmem:[%s4 + $0x58] sm:$0xff] %v929
  %946 = vst [vmem:[%s4 + $0x60] sm:$0xff] %v930
  %947 = vst [vmem:[%s4 + $0x68] sm:$0xff] %v931
  %948 = vst [vmem:[%s4 + $0x70] sm:$0xff] %v932
  %949 = vst [vmem:[%s4 + $0x78] sm:$0xff] %v933
  %v950 = vpack.c.bf16 %v919, %v918
  %v951 = vpack.c.bf16 %v921, %v920
  %v952 = vpack.c.bf16 %v923, %v922
  %v953 = vpack.c.bf16 %v925, %v924
  %v954 = vpack.c.bf16 %v927, %v926
  %v955 = vpack.c.bf16 %v929, %v928
  %v956 = vpack.c.bf16 %v931, %v930
  %v957 = vpack.c.bf16 %v933, %v932
  %s958 = scalar_lea.vmem %s2, 256
  %v959 = vld [vmem:[%s958] sm:$0xf]
  %v960 = vld [vmem:[%s958 + $0x4] sm:$0xf]
  %v961 = vld [vmem:[%s958 + $0x8] sm:$0xf]
  %v962 = vld [vmem:[%s958 + $0xc] sm:$0xf]
  %v963 = vld [vmem:[%s958 + $0x10] sm:$0xf]
  %v964 = vld [vmem:[%s958 + $0x14] sm:$0xf]
  %v965 = vld [vmem:[%s958 + $0x18] sm:$0xf]
  %v966 = vld [vmem:[%s958 + $0x1c] sm:$0xf]
  %v967 = vld [vmem:[%s958 + $0x20] sm:$0xf]
  %v968 = vld [vmem:[%s958 + $0x24] sm:$0xf]
  %v969 = vld [vmem:[%s958 + $0x28] sm:$0xf]
  %v970 = vld [vmem:[%s958 + $0x2c] sm:$0xf]
  %v971 = vld [vmem:[%s958 + $0x30] sm:$0xf]
  %v972 = vld [vmem:[%s958 + $0x34] sm:$0xf]
  %v973 = vld [vmem:[%s958 + $0x38] sm:$0xf]
  %v974 = vld [vmem:[%s958 + $0x3c] sm:$0xf]
  %v991 = vunpack.c.l.b16 %v959
  %v992 = vunpack.c.l.b16 %v960
  %v993 = vunpack.c.l.b16 %v961
  %v994 = vunpack.c.l.b16 %v962
  %v995 = vunpack.c.l.b16 %v963
  %v996 = vunpack.c.l.b16 %v964
  %v997 = vunpack.c.l.b16 %v965
  %v998 = vunpack.c.l.b16 %v966
  %v999 = vunpack.c.l.b16 %v967
  %v1000 = vunpack.c.l.b16 %v968
  %v1001 = vunpack.c.l.b16 %v969
  %v1002 = vunpack.c.l.b16 %v970
  %v1003 = vunpack.c.l.b16 %v971
  %v1004 = vunpack.c.l.b16 %v972
  %v1005 = vunpack.c.l.b16 %v973
  %v1006 = vunpack.c.l.b16 %v974
  %v1007 = vpack.c.b16 %v992, %v991
  %v1008 = vpack.c.b16 %v994, %v993
  %v1009 = vpack.c.b16 %v996, %v995
  %v1010 = vpack.c.b16 %v998, %v997
  %v1011 = vpack.c.b16 %v1000, %v999
  %v1012 = vpack.c.b16 %v1002, %v1001
  %v1013 = vpack.c.b16 %v1004, %v1003
  %v1014 = vpack.c.b16 %v1006, %v1005
  %1023 = vmatpush.bf16.msra.mxu0 %v1014
  %1024 = vmatpush.bf16.msra.mxu0 %v1013
  %1025 = vmatpush.bf16.msra.mxu0 %v1012
  %1026 = vmatpush.bf16.msra.mxu0 %v1011
  %1027 = vmatpush.bf16.msra.mxu0 %v1010
  %1028 = vmatpush.bf16.msra.mxu0 %v1009
  %1029 = vmatpush.bf16.msra.mxu0 %v1008
  %1030 = vmatpush.bf16.msra.mxu0 %v1007
  %1031 = vmatmul.bf16.gmra.mxu0 %v950
  %v1032 = vpop.f32.mrf.mxu0
  %v1033 = vadd.f32 0.0, %v1032
  %v1034 = vpop.f32.mrf.mxu0
  %v1035 = vadd.f32 0.0, %v1034
  %1036 = vmatmul.bf16.gmra.mxu0 %v951
  %v1037 = vpop.f32.mrf.mxu0
  %v1038 = vadd.f32 0.0, %v1037
  %v1039 = vpop.f32.mrf.mxu0
  %v1040 = vadd.f32 0.0, %v1039
  %1041 = vmatmul.bf16.gmra.mxu0 %v952
  %v1042 = vpop.f32.mrf.mxu0
  %v1043 = vadd.f32 0.0, %v1042
  %v1044 = vpop.f32.mrf.mxu0
  %v1045 = vadd.f32 0.0, %v1044
  %1046 = vmatmul.bf16.gmra.mxu0 %v953
  %v1047 = vpop.f32.mrf.mxu0
  %v1048 = vadd.f32 0.0, %v1047
  %v1049 = vpop.f32.mrf.mxu0
  %v1050 = vadd.f32 0.0, %v1049
  %1051 = vmatmul.bf16.gmra.mxu0 %v954
  %v1052 = vpop.f32.mrf.mxu0
  %v1053 = vadd.f32 0.0, %v1052
  %v1054 = vpop.f32.mrf.mxu0
  %v1055 = vadd.f32 0.0, %v1054
  %1056 = vmatmul.bf16.gmra.mxu0 %v955
  %v1057 = vpop.f32.mrf.mxu0
  %v1058 = vadd.f32 0.0, %v1057
  %v1059 = vpop.f32.mrf.mxu0
  %v1060 = vadd.f32 0.0, %v1059
  %1061 = vmatmul.bf16.gmra.mxu0 %v956
  %v1062 = vpop.f32.mrf.mxu0
  %v1063 = vadd.f32 0.0, %v1062
  %v1064 = vpop.f32.mrf.mxu0
  %v1065 = vadd.f32 0.0, %v1064
  %1066 = vmatmul.bf16.gmra.mxu0 %v957
  %v1067 = vpop.f32.mrf.mxu0
  %v1068 = vadd.f32 0.0, %v1067
  %v1069 = vpop.f32.mrf.mxu0
  %v1070 = vadd.f32 0.0, %v1069
  %1071 = vdwg.mxu0
  %v1072 = vmul.f32 %v1033, 2.0
  %v1073 = vmul.f32 %v1035, 2.0
  %v1074 = vmul.f32 %v1038, 2.0
  %v1075 = vmul.f32 %v1040, 2.0
  %v1076 = vmul.f32 %v1043, 2.0
  %v1077 = vmul.f32 %v1045, 2.0
  %v1078 = vmul.f32 %v1048, 2.0
  %v1079 = vmul.f32 %v1050, 2.0
  %v1080 = vmul.f32 %v1053, 2.0
  %v1081 = vmul.f32 %v1055, 2.0
  %v1082 = vmul.f32 %v1058, 2.0
  %v1083 = vmul.f32 %v1060, 2.0
  %v1084 = vmul.f32 %v1063, 2.0
  %v1085 = vmul.f32 %v1065, 2.0
  %v1086 = vmul.f32 %v1068, 2.0
  %v1087 = vmul.f32 %v1070, 2.0
  %v1088 = vperm.slane %v37, 7
  %v1089 = vsub.f32 %v1088, %v1072
  %v1090 = vsub.f32 %v1088, %v1073
  %v1091 = vsub.f32 %v1088, %v1074
  %v1092 = vsub.f32 %v1088, %v1075
  %v1093 = vsub.f32 %v1088, %v1076
  %v1094 = vsub.f32 %v1088, %v1077
  %v1095 = vsub.f32 %v1088, %v1078
  %v1096 = vsub.f32 %v1088, %v1079
  %v1097 = vsub.f32 %v1088, %v1080
  %v1098 = vsub.f32 %v1088, %v1081
  %v1099 = vsub.f32 %v1088, %v1082
  %v1100 = vsub.f32 %v1088, %v1083
  %v1101 = vsub.f32 %v1088, %v1084
  %v1102 = vsub.f32 %v1088, %v1085
  %v1103 = vsub.f32 %v1088, %v1086
  %v1104 = vsub.f32 %v1088, %v1087
  %v1105 = vlaneseq
  %v1106 = vand.u32 %v1105, 127
  %1107 = vmin.xlane.f32.xlu0 %v1089
  %v1108 = vpop.xlane.xlu0 %1107
  %1109 = vmin.xlane.f32.xlu0 %v1090
  %v1110 = vpop.xlane.xlu0 %1109
  %1111 = vmin.xlane.f32.xlu0 %v1091
  %v1112 = vpop.xlane.xlu0 %1111
  %1113 = vmin.xlane.f32.xlu0 %v1092
  %v1114 = vpop.xlane.xlu0 %1113
  %1115 = vmin.xlane.f32.xlu0 %v1093
  %v1116 = vpop.xlane.xlu0 %1115
  %1117 = vmin.xlane.f32.xlu0 %v1094
  %v1118 = vpop.xlane.xlu0 %1117
  %1119 = vmin.xlane.f32.xlu0 %v1095
  %v1120 = vpop.xlane.xlu0 %1119
  %1121 = vmin.xlane.f32.xlu0 %v1096
  %v1122 = vpop.xlane.xlu0 %1121
  %1123 = vmin.xlane.f32.xlu0 %v1097
  %v1124 = vpop.xlane.xlu0 %1123
  %1125 = vmin.xlane.f32.xlu0 %v1098
  %v1126 = vpop.xlane.xlu0 %1125
  %1127 = vmin.xlane.f32.xlu0 %v1099
  %v1128 = vpop.xlane.xlu0 %1127
  %1129 = vmin.xlane.f32.xlu0 %v1100
  %v1130 = vpop.xlane.xlu0 %1129
  %1131 = vmin.xlane.f32.xlu0 %v1101
  %v1132 = vpop.xlane.xlu0 %1131
  %1133 = vmin.xlane.f32.xlu0 %v1102
  %v1134 = vpop.xlane.xlu0 %1133
  %1135 = vmin.xlane.f32.xlu0 %v1103
  %v1136 = vpop.xlane.xlu0 %1135
  %1137 = vmin.xlane.f32.xlu0 %v1104
  %v1138 = vpop.xlane.xlu0 %1137
  %vm1139 = vcmp.eq.f32.partialorder %v1089, %v1108
  %vm1140 = vcmp.eq.f32.partialorder %v1090, %v1110
  %vm1141 = vcmp.eq.f32.partialorder %v1091, %v1112
  %vm1142 = vcmp.eq.f32.partialorder %v1092, %v1114
  %vm1143 = vcmp.eq.f32.partialorder %v1093, %v1116
  %vm1144 = vcmp.eq.f32.partialorder %v1094, %v1118
  %vm1145 = vcmp.eq.f32.partialorder %v1095, %v1120
  %vm1146 = vcmp.eq.f32.partialorder %v1096, %v1122
  %vm1147 = vcmp.eq.f32.partialorder %v1097, %v1124
  %vm1148 = vcmp.eq.f32.partialorder %v1098, %v1126
  %vm1149 = vcmp.eq.f32.partialorder %v1099, %v1128
  %vm1150 = vcmp.eq.f32.partialorder %v1100, %v1130
  %vm1151 = vcmp.eq.f32.partialorder %v1101, %v1132
  %vm1152 = vcmp.eq.f32.partialorder %v1102, %v1134
  %vm1153 = vcmp.eq.f32.partialorder %v1103, %v1136
  %vm1154 = vcmp.eq.f32.partialorder %v1104, %v1138
  %v1155 = vsel %vm1139, %v1106, 128
  %v1156 = vsel %vm1140, %v1106, 128
  %v1157 = vsel %vm1141, %v1106, 128
  %v1158 = vsel %vm1142, %v1106, 128
  %v1159 = vsel %vm1143, %v1106, 128
  %v1160 = vsel %vm1144, %v1106, 128
  %v1161 = vsel %vm1145, %v1106, 128
  %v1162 = vsel %vm1146, %v1106, 128
  %v1163 = vsel %vm1147, %v1106, 128
  %v1164 = vsel %vm1148, %v1106, 128
  %v1165 = vsel %vm1149, %v1106, 128
  %v1166 = vsel %vm1150, %v1106, 128
  %v1167 = vsel %vm1151, %v1106, 128
  %v1168 = vsel %vm1152, %v1106, 128
  %v1169 = vsel %vm1153, %v1106, 128
  %v1170 = vsel %vm1154, %v1106, 128
  %v1171 = vand.u32 %v1155, 65535
  %v1172 = vshra.s32 %v1155, 16
  %v1173 = vcvt.s32.f32 %v1171
  %v1174 = vcvt.s32.f32 %v1172
  %1175 = vmin.xlane.f32.xlu0 %v1174
  %v1176 = vpop.xlane.xlu0 %1175
  %vm1177 = vcmp.eq.f32.partialorder %v1174, %v1176
  %v1178 = vsel %vm1177, %v1173, inf
  %1179 = vmin.xlane.f32.xlu0 %v1178
  %v1180 = vpop.xlane.xlu0 %1179
  %v1181 = vcvt.f32.s32 %v1180
  %v1182 = vcvt.f32.s32 %v1176
  %v1183 = vshll.u32 %v1182, 16
  %v1184 = vadd.s32 %v1183, %v1181
  %v1185 = vand.u32 %v1156, 65535
  %v1186 = vshra.s32 %v1156, 16
  %v1187 = vcvt.s32.f32 %v1185
  %v1188 = vcvt.s32.f32 %v1186
  %1189 = vmin.xlane.f32.xlu0 %v1188
  %v1190 = vpop.xlane.xlu0 %1189
  %vm1191 = vcmp.eq.f32.partialorder %v1188, %v1190
  %v1192 = vsel %vm1191, %v1187, inf
  %1193 = vmin.xlane.f32.xlu0 %v1192
  %v1194 = vpop.xlane.xlu0 %1193
  %v1195 = vcvt.f32.s32 %v1194
  %v1196 = vcvt.f32.s32 %v1190
  %v1197 = vshll.u32 %v1196, 16
  %v1198 = vadd.s32 %v1197, %v1195
  %v1199 = vand.u32 %v1157, 65535
  %v1200 = vshra.s32 %v1157, 16
  %v1201 = vcvt.s32.f32 %v1199
  %v1202 = vcvt.s32.f32 %v1200
  %1203 = vmin.xlane.f32.xlu0 %v1202
  %v1204 = vpop.xlane.xlu0 %1203
  %vm1205 = vcmp.eq.f32.partialorder %v1202, %v1204
  %v1206 = vsel %vm1205, %v1201, inf
  %1207 = vmin.xlane.f32.xlu0 %v1206
  %v1208 = vpop.xlane.xlu0 %1207
  %v1209 = vcvt.f32.s32 %v1208
  %v1210 = vcvt.f32.s32 %v1204
  %v1211 = vshll.u32 %v1210, 16
  %v1212 = vadd.s32 %v1211, %v1209
  %v1213 = vand.u32 %v1158, 65535
  %v1214 = vshra.s32 %v1158, 16
  %v1215 = vcvt.s32.f32 %v1213
  %v1216 = vcvt.s32.f32 %v1214
  %1217 = vmin.xlane.f32.xlu0 %v1216
  %v1218 = vpop.xlane.xlu0 %1217
  %vm1219 = vcmp.eq.f32.partialorder %v1216, %v1218
  %v1220 = vsel %vm1219, %v1215, inf
  %1221 = vmin.xlane.f32.xlu0 %v1220
  %v1222 = vpop.xlane.xlu0 %1221
  %v1223 = vcvt.f32.s32 %v1222
  %v1224 = vcvt.f32.s32 %v1218
  %v1225 = vshll.u32 %v1224, 16
  %v1226 = vadd.s32 %v1225, %v1223
  %v1227 = vand.u32 %v1159, 65535
  %v1228 = vshra.s32 %v1159, 16
  %v1229 = vcvt.s32.f32 %v1227
  %v1230 = vcvt.s32.f32 %v1228
  %1231 = vmin.xlane.f32.xlu0 %v1230
  %v1232 = vpop.xlane.xlu0 %1231
  %vm1233 = vcmp.eq.f32.partialorder %v1230, %v1232
  %v1234 = vsel %vm1233, %v1229, inf
  %1235 = vmin.xlane.f32.xlu0 %v1234
  %v1236 = vpop.xlane.xlu0 %1235
  %v1237 = vcvt.f32.s32 %v1236
  %v1238 = vcvt.f32.s32 %v1232
  %v1239 = vshll.u32 %v1238, 16
  %v1240 = vadd.s32 %v1239, %v1237
  %v1241 = vand.u32 %v1160, 65535
  %v1242 = vshra.s32 %v1160, 16
  %v1243 = vcvt.s32.f32 %v1241
  %v1244 = vcvt.s32.f32 %v1242
  %1245 = vmin.xlane.f32.xlu0 %v1244
  %v1246 = vpop.xlane.xlu0 %1245
  %vm1247 = vcmp.eq.f32.partialorder %v1244, %v1246
  %v1248 = vsel %vm1247, %v1243, inf
  %1249 = vmin.xlane.f32.xlu0 %v1248
  %v1250 = vpop.xlane.xlu0 %1249
  %v1251 = vcvt.f32.s32 %v1250
  %v1252 = vcvt.f32.s32 %v1246
  %v1253 = vshll.u32 %v1252, 16
  %v1254 = vadd.s32 %v1253, %v1251
  %v1255 = vand.u32 %v1161, 65535
  %v1256 = vshra.s32 %v1161, 16
  %v1257 = vcvt.s32.f32 %v1255
  %v1258 = vcvt.s32.f32 %v1256
  %1259 = vmin.xlane.f32.xlu0 %v1258
  %v1260 = vpop.xlane.xlu0 %1259
  %vm1261 = vcmp.eq.f32.partialorder %v1258, %v1260
  %v1262 = vsel %vm1261, %v1257, inf
  %1263 = vmin.xlane.f32.xlu0 %v1262
  %v1264 = vpop.xlane.xlu0 %1263
  %v1265 = vcvt.f32.s32 %v1264
  %v1266 = vcvt.f32.s32 %v1260
  %v1267 = vshll.u32 %v1266, 16
  %v1268 = vadd.s32 %v1267, %v1265
  %v1269 = vand.u32 %v1162, 65535
  %v1270 = vshra.s32 %v1162, 16
  %v1271 = vcvt.s32.f32 %v1269
  %v1272 = vcvt.s32.f32 %v1270
  %1273 = vmin.xlane.f32.xlu0 %v1272
  %v1274 = vpop.xlane.xlu0 %1273
  %vm1275 = vcmp.eq.f32.partialorder %v1272, %v1274
  %v1276 = vsel %vm1275, %v1271, inf
  %1277 = vmin.xlane.f32.xlu0 %v1276
  %v1278 = vpop.xlane.xlu0 %1277
  %v1279 = vcvt.f32.s32 %v1278
  %v1280 = vcvt.f32.s32 %v1274
  %v1281 = vshll.u32 %v1280, 16
  %v1282 = vadd.s32 %v1281, %v1279
  %v1283 = vand.u32 %v1163, 65535
  %v1284 = vshra.s32 %v1163, 16
  %v1285 = vcvt.s32.f32 %v1283
  %v1286 = vcvt.s32.f32 %v1284
  %1287 = vmin.xlane.f32.xlu0 %v1286
  %v1288 = vpop.xlane.xlu0 %1287
  %vm1289 = vcmp.eq.f32.partialorder %v1286, %v1288
  %v1290 = vsel %vm1289, %v1285, inf
  %1291 = vmin.xlane.f32.xlu0 %v1290
  %v1292 = vpop.xlane.xlu0 %1291
  %v1293 = vcvt.f32.s32 %v1292
  %v1294 = vcvt.f32.s32 %v1288
  %v1295 = vshll.u32 %v1294, 16
  %v1296 = vadd.s32 %v1295, %v1293
  %v1297 = vand.u32 %v1164, 65535
  %v1298 = vshra.s32 %v1164, 16
  %v1299 = vcvt.s32.f32 %v1297
  %v1300 = vcvt.s32.f32 %v1298
  %1301 = vmin.xlane.f32.xlu0 %v1300
  %v1302 = vpop.xlane.xlu0 %1301
  %vm1303 = vcmp.eq.f32.partialorder %v1300, %v1302
  %v1304 = vsel %vm1303, %v1299, inf
  %1305 = vmin.xlane.f32.xlu0 %v1304
  %v1306 = vpop.xlane.xlu0 %1305
  %v1307 = vcvt.f32.s32 %v1306
  %v1308 = vcvt.f32.s32 %v1302
  %v1309 = vshll.u32 %v1308, 16
  %v1310 = vadd.s32 %v1309, %v1307
  %v1311 = vand.u32 %v1165, 65535
  %v1312 = vshra.s32 %v1165, 16
  %v1313 = vcvt.s32.f32 %v1311
  %v1314 = vcvt.s32.f32 %v1312
  %1315 = vmin.xlane.f32.xlu0 %v1314
  %v1316 = vpop.xlane.xlu0 %1315
  %vm1317 = vcmp.eq.f32.partialorder %v1314, %v1316
  %v1318 = vsel %vm1317, %v1313, inf
  %1319 = vmin.xlane.f32.xlu0 %v1318
  %v1320 = vpop.xlane.xlu0 %1319
  %v1321 = vcvt.f32.s32 %v1320
  %v1322 = vcvt.f32.s32 %v1316
  %v1323 = vshll.u32 %v1322, 16
  %v1324 = vadd.s32 %v1323, %v1321
  %v1325 = vand.u32 %v1166, 65535
  %v1326 = vshra.s32 %v1166, 16
  %v1327 = vcvt.s32.f32 %v1325
  %v1328 = vcvt.s32.f32 %v1326
  %1329 = vmin.xlane.f32.xlu0 %v1328
  %v1330 = vpop.xlane.xlu0 %1329
  %vm1331 = vcmp.eq.f32.partialorder %v1328, %v1330
  %v1332 = vsel %vm1331, %v1327, inf
  %1333 = vmin.xlane.f32.xlu0 %v1332
  %v1334 = vpop.xlane.xlu0 %1333
  %v1335 = vcvt.f32.s32 %v1334
  %v1336 = vcvt.f32.s32 %v1330
  %v1337 = vshll.u32 %v1336, 16
  %v1338 = vadd.s32 %v1337, %v1335
  %v1339 = vand.u32 %v1167, 65535
  %v1340 = vshra.s32 %v1167, 16
  %v1341 = vcvt.s32.f32 %v1339
  %v1342 = vcvt.s32.f32 %v1340
  %1343 = vmin.xlane.f32.xlu0 %v1342
  %v1344 = vpop.xlane.xlu0 %1343
  %vm1345 = vcmp.eq.f32.partialorder %v1342, %v1344
  %v1346 = vsel %vm1345, %v1341, inf
  %1347 = vmin.xlane.f32.xlu0 %v1346
  %v1348 = vpop.xlane.xlu0 %1347
  %v1349 = vcvt.f32.s32 %v1348
  %v1350 = vcvt.f32.s32 %v1344
  %v1351 = vshll.u32 %v1350, 16
  %v1352 = vadd.s32 %v1351, %v1349
  %v1353 = vand.u32 %v1168, 65535
  %v1354 = vshra.s32 %v1168, 16
  %v1355 = vcvt.s32.f32 %v1353
  %v1356 = vcvt.s32.f32 %v1354
  %1357 = vmin.xlane.f32.xlu0 %v1356
  %v1358 = vpop.xlane.xlu0 %1357
  %vm1359 = vcmp.eq.f32.partialorder %v1356, %v1358
  %v1360 = vsel %vm1359, %v1355, inf
  %1361 = vmin.xlane.f32.xlu0 %v1360
  %v1362 = vpop.xlane.xlu0 %1361
  %v1363 = vcvt.f32.s32 %v1362
  %v1364 = vcvt.f32.s32 %v1358
  %v1365 = vshll.u32 %v1364, 16
  %v1366 = vadd.s32 %v1365, %v1363
  %v1367 = vand.u32 %v1169, 65535
  %v1368 = vshra.s32 %v1169, 16
  %v1369 = vcvt.s32.f32 %v1367
  %v1370 = vcvt.s32.f32 %v1368
  %1371 = vmin.xlane.f32.xlu0 %v1370
  %v1372 = vpop.xlane.xlu0 %1371
  %vm1373 = vcmp.eq.f32.partialorder %v1370, %v1372
  %v1374 = vsel %vm1373, %v1369, inf
  %1375 = vmin.xlane.f32.xlu0 %v1374
  %v1376 = vpop.xlane.xlu0 %1375
  %v1377 = vcvt.f32.s32 %v1376
  %v1378 = vcvt.f32.s32 %v1372
  %v1379 = vshll.u32 %v1378, 16
  %v1380 = vadd.s32 %v1379, %v1377
  %v1381 = vand.u32 %v1170, 65535
  %v1382 = vshra.s32 %v1170, 16
  %v1383 = vcvt.s32.f32 %v1381
  %v1384 = vcvt.s32.f32 %v1382
  %1385 = vmin.xlane.f32.xlu0 %v1384
  %v1386 = vpop.xlane.xlu0 %1385
  %vm1387 = vcmp.eq.f32.partialorder %v1384, %v1386
  %v1388 = vsel %vm1387, %v1383, inf
  %1389 = vmin.xlane.f32.xlu0 %v1388
  %v1390 = vpop.xlane.xlu0 %1389
  %v1391 = vcvt.f32.s32 %v1390
  %v1392 = vcvt.f32.s32 %v1386
  %v1393 = vshll.u32 %v1392, 16
  %v1394 = vadd.s32 %v1393, %v1391
  %vm1395 = vcmp.eq.s32.totalorder %v1106, %v1184
  %vm1396 = vcmp.eq.s32.totalorder %v1106, %v1198
  %vm1397 = vcmp.eq.s32.totalorder %v1106, %v1212
  %vm1398 = vcmp.eq.s32.totalorder %v1106, %v1226
  %vm1399 = vcmp.eq.s32.totalorder %v1106, %v1240
  %vm1400 = vcmp.eq.s32.totalorder %v1106, %v1254
  %vm1401 = vcmp.eq.s32.totalorder %v1106, %v1268
  %vm1402 = vcmp.eq.s32.totalorder %v1106, %v1282
  %vm1403 = vcmp.eq.s32.totalorder %v1106, %v1296
  %vm1404 = vcmp.eq.s32.totalorder %v1106, %v1310
  %vm1405 = vcmp.eq.s32.totalorder %v1106, %v1324
  %vm1406 = vcmp.eq.s32.totalorder %v1106, %v1338
  %vm1407 = vcmp.eq.s32.totalorder %v1106, %v1352
  %vm1408 = vcmp.eq.s32.totalorder %v1106, %v1366
  %vm1409 = vcmp.eq.s32.totalorder %v1106, %v1380
  %vm1410 = vcmp.eq.s32.totalorder %v1106, %v1394
  %v1411 = vsel %vm1395, 1, 0
  %v1412 = vsel %vm1396, 1, 0
  %v1413 = vsel %vm1397, 1, 0
  %v1414 = vsel %vm1398, 1, 0
  %v1415 = vsel %vm1399, 1, 0
  %v1416 = vsel %vm1400, 1, 0
  %v1417 = vsel %vm1401, 1, 0
  %v1418 = vsel %vm1402, 1, 0
  %v1419 = vsel %vm1403, 1, 0
  %v1420 = vsel %vm1404, 1, 0
  %v1421 = vsel %vm1405, 1, 0
  %v1422 = vsel %vm1406, 1, 0
  %v1423 = vsel %vm1407, 1, 0
  %v1424 = vsel %vm1408, 1, 0
  %v1425 = vsel %vm1409, 1, 0
  %v1426 = vsel %vm1410, 1, 0
  %v1427 = vcvt.s32.f32 %v1411
  %v1428 = vcvt.s32.f32 %v1412
  %v1429 = vcvt.s32.f32 %v1413
  %v1430 = vcvt.s32.f32 %v1414
  %v1431 = vcvt.s32.f32 %v1415
  %v1432 = vcvt.s32.f32 %v1416
  %v1433 = vcvt.s32.f32 %v1417
  %v1434 = vcvt.s32.f32 %v1418
  %v1435 = vcvt.s32.f32 %v1419
  %v1436 = vcvt.s32.f32 %v1420
  %v1437 = vcvt.s32.f32 %v1421
  %v1438 = vcvt.s32.f32 %v1422
  %v1439 = vcvt.s32.f32 %v1423
  %v1440 = vcvt.s32.f32 %v1424
  %v1441 = vcvt.s32.f32 %v1425
  %v1442 = vcvt.s32.f32 %v1426
  %v1443 = vpack.c.bf16 %v1428, %v1427
  %v1444 = vpack.c.bf16 %v1430, %v1429
  %v1445 = vpack.c.bf16 %v1432, %v1431
  %v1446 = vpack.c.bf16 %v1434, %v1433
  %v1447 = vpack.c.bf16 %v1436, %v1435
  %v1448 = vpack.c.bf16 %v1438, %v1437
  %v1449 = vpack.c.bf16 %v1440, %v1439
  %v1450 = vpack.c.bf16 %v1442, %v1441
  %s1451 = scalar_lea.vmem %s2, 320
  %v1452 = vld [vmem:[%s1451] sm:$0xf]
  %v1453 = vld [vmem:[%s1451 + $0x4] sm:$0xf]
  %v1454 = vld [vmem:[%s1451 + $0x8] sm:$0xf]
  %v1455 = vld [vmem:[%s1451 + $0xc] sm:$0xf]
  %v1456 = vld [vmem:[%s1451 + $0x10] sm:$0xf]
  %v1457 = vld [vmem:[%s1451 + $0x14] sm:$0xf]
  %v1458 = vld [vmem:[%s1451 + $0x18] sm:$0xf]
  %v1459 = vld [vmem:[%s1451 + $0x1c] sm:$0xf]
  %v1460 = vld [vmem:[%s1451 + $0x20] sm:$0xf]
  %v1461 = vld [vmem:[%s1451 + $0x24] sm:$0xf]
  %v1462 = vld [vmem:[%s1451 + $0x28] sm:$0xf]
  %v1463 = vld [vmem:[%s1451 + $0x2c] sm:$0xf]
  %v1464 = vld [vmem:[%s1451 + $0x30] sm:$0xf]
  %v1465 = vld [vmem:[%s1451 + $0x34] sm:$0xf]
  %v1466 = vld [vmem:[%s1451 + $0x38] sm:$0xf]
  %v1467 = vld [vmem:[%s1451 + $0x3c] sm:$0xf]
  %s1468 = scalar_lea.vmem %s2, 384
  %v1469 = vld [vmem:[%s1468] sm:$0xf]
  %v1470 = vld [vmem:[%s1468 + $0x4] sm:$0xf]
  %v1471 = vld [vmem:[%s1468 + $0x8] sm:$0xf]
  %v1472 = vld [vmem:[%s1468 + $0xc] sm:$0xf]
  %v1473 = vld [vmem:[%s1468 + $0x10] sm:$0xf]
  %v1474 = vld [vmem:[%s1468 + $0x14] sm:$0xf]
  %v1475 = vld [vmem:[%s1468 + $0x18] sm:$0xf]
  %v1476 = vld [vmem:[%s1468 + $0x1c] sm:$0xf]
  %v1477 = vld [vmem:[%s1468 + $0x20] sm:$0xf]
  %v1478 = vld [vmem:[%s1468 + $0x24] sm:$0xf]
  %v1479 = vld [vmem:[%s1468 + $0x28] sm:$0xf]
  %v1480 = vld [vmem:[%s1468 + $0x2c] sm:$0xf]
  %v1481 = vld [vmem:[%s1468 + $0x30] sm:$0xf]
  %v1482 = vld [vmem:[%s1468 + $0x34] sm:$0xf]
  %v1483 = vld [vmem:[%s1468 + $0x38] sm:$0xf]
  %v1484 = vld [vmem:[%s1468 + $0x3c] sm:$0xf]
  %v1501 = vunpack.c.l.b16 %v1469
  %v1502 = vunpack.c.l.b16 %v1470
  %v1503 = vunpack.c.l.b16 %v1471
  %v1504 = vunpack.c.l.b16 %v1472
  %v1505 = vunpack.c.l.b16 %v1473
  %v1506 = vunpack.c.l.b16 %v1474
  %v1507 = vunpack.c.l.b16 %v1475
  %v1508 = vunpack.c.l.b16 %v1476
  %v1509 = vunpack.c.l.b16 %v1477
  %v1510 = vunpack.c.l.b16 %v1478
  %v1511 = vunpack.c.l.b16 %v1479
  %v1512 = vunpack.c.l.b16 %v1480
  %v1513 = vunpack.c.l.b16 %v1481
  %v1514 = vunpack.c.l.b16 %v1482
  %v1515 = vunpack.c.l.b16 %v1483
  %v1516 = vunpack.c.l.b16 %v1484
  %v1517 = vpack.c.b16 %v1502, %v1501
  %v1518 = vpack.c.b16 %v1504, %v1503
  %v1519 = vpack.c.b16 %v1506, %v1505
  %v1520 = vpack.c.b16 %v1508, %v1507
  %v1521 = vpack.c.b16 %v1510, %v1509
  %v1522 = vpack.c.b16 %v1512, %v1511
  %v1523 = vpack.c.b16 %v1514, %v1513
  %v1524 = vpack.c.b16 %v1516, %v1515
  %1533 = vmatpush.bf16.msra.mxu0 %v1524
  %1534 = vmatpush.bf16.msra.mxu0 %v1523
  %1535 = vmatpush.bf16.msra.mxu0 %v1522
  %1536 = vmatpush.bf16.msra.mxu0 %v1521
  %1537 = vmatpush.bf16.msra.mxu0 %v1520
  %1538 = vmatpush.bf16.msra.mxu0 %v1519
  %1539 = vmatpush.bf16.msra.mxu0 %v1518
  %1540 = vmatpush.bf16.msra.mxu0 %v1517
  %1541 = vmatmul.bf16.gmra.mxu0 %v1443
  %v1542 = vpop.f32.mrf.mxu0
  %v1543 = vadd.f32 0.0, %v1542
  %v1544 = vpop.f32.mrf.mxu0
  %v1545 = vadd.f32 0.0, %v1544
  %1546 = vmatmul.bf16.gmra.mxu0 %v1444
  %v1547 = vpop.f32.mrf.mxu0
  %v1548 = vadd.f32 0.0, %v1547
  %v1549 = vpop.f32.mrf.mxu0
  %v1550 = vadd.f32 0.0, %v1549
  %1551 = vmatmul.bf16.gmra.mxu0 %v1445
  %v1552 = vpop.f32.mrf.mxu0
  %v1553 = vadd.f32 0.0, %v1552
  %v1554 = vpop.f32.mrf.mxu0
  %v1555 = vadd.f32 0.0, %v1554
  %1556 = vmatmul.bf16.gmra.mxu0 %v1446
  %v1557 = vpop.f32.mrf.mxu0
  %v1558 = vadd.f32 0.0, %v1557
  %v1559 = vpop.f32.mrf.mxu0
  %v1560 = vadd.f32 0.0, %v1559
  %1561 = vmatmul.bf16.gmra.mxu0 %v1447
  %v1562 = vpop.f32.mrf.mxu0
  %v1563 = vadd.f32 0.0, %v1562
  %v1564 = vpop.f32.mrf.mxu0
  %v1565 = vadd.f32 0.0, %v1564
  %1566 = vmatmul.bf16.gmra.mxu0 %v1448
  %v1567 = vpop.f32.mrf.mxu0
  %v1568 = vadd.f32 0.0, %v1567
  %v1569 = vpop.f32.mrf.mxu0
  %v1570 = vadd.f32 0.0, %v1569
  %1571 = vmatmul.bf16.gmra.mxu0 %v1449
  %v1572 = vpop.f32.mrf.mxu0
  %v1573 = vadd.f32 0.0, %v1572
  %v1574 = vpop.f32.mrf.mxu0
  %v1575 = vadd.f32 0.0, %v1574
  %1576 = vmatmul.bf16.gmra.mxu0 %v1450
  %v1577 = vpop.f32.mrf.mxu0
  %v1578 = vadd.f32 0.0, %v1577
  %v1579 = vpop.f32.mrf.mxu0
  %v1580 = vadd.f32 0.0, %v1579
  %1581 = vdwg.mxu0
  %v1598 = vunpack.c.l.b16 %v1452
  %v1599 = vunpack.c.l.b16 %v1453
  %v1600 = vunpack.c.l.b16 %v1454
  %v1601 = vunpack.c.l.b16 %v1455
  %v1602 = vunpack.c.l.b16 %v1456
  %v1603 = vunpack.c.l.b16 %v1457
  %v1604 = vunpack.c.l.b16 %v1458
  %v1605 = vunpack.c.l.b16 %v1459
  %v1606 = vunpack.c.l.b16 %v1460
  %v1607 = vunpack.c.l.b16 %v1461
  %v1608 = vunpack.c.l.b16 %v1462
  %v1609 = vunpack.c.l.b16 %v1463
  %v1610 = vunpack.c.l.b16 %v1464
  %v1611 = vunpack.c.l.b16 %v1465
  %v1612 = vunpack.c.l.b16 %v1466
  %v1613 = vunpack.c.l.b16 %v1467
  %v1614 = vpack.c.b16 %v1599, %v1598
  %v1615 = vpack.c.b16 %v1601, %v1600
  %v1616 = vpack.c.b16 %v1603, %v1602
  %v1617 = vpack.c.b16 %v1605, %v1604
  %v1618 = vpack.c.b16 %v1607, %v1606
  %v1619 = vpack.c.b16 %v1609, %v1608
  %v1620 = vpack.c.b16 %v1611, %v1610
  %v1621 = vpack.c.b16 %v1613, %v1612
  %1630 = vmatpush.bf16.msra.mxu0 %v1621
  %1631 = vmatpush.bf16.msra.mxu0 %v1620
  %1632 = vmatpush.bf16.msra.mxu0 %v1619
  %1633 = vmatpush.bf16.msra.mxu0 %v1618
  %1634 = vmatpush.bf16.msra.mxu0 %v1617
  %1635 = vmatpush.bf16.msra.mxu0 %v1616
  %1636 = vmatpush.bf16.msra.mxu0 %v1615
  %1637 = vmatpush.bf16.msra.mxu0 %v1614
  %1638 = vmatmul.bf16.gmra.mxu0 %v1443
  %v1639 = vpop.f32.mrf.mxu0
  %v1640 = vadd.f32 %v1543, %v1639
  %v1641 = vpop.f32.mrf.mxu0
  %v1642 = vadd.f32 %v1545, %v1641
  %1643 = vmatmul.bf16.gmra.mxu0 %v1444
  %v1644 = vpop.f32.mrf.mxu0
  %v1645 = vadd.f32 %v1548, %v1644
  %v1646 = vpop.f32.mrf.mxu0
  %v1647 = vadd.f32 %v1550, %v1646
  %1648 = vmatmul.bf16.gmra.mxu0 %v1445
  %v1649 = vpop.f32.mrf.mxu0
  %v1650 = vadd.f32 %v1553, %v1649
  %v1651 = vpop.f32.mrf.mxu0
  %v1652 = vadd.f32 %v1555, %v1651
  %1653 = vmatmul.bf16.gmra.mxu0 %v1446
  %v1654 = vpop.f32.mrf.mxu0
  %v1655 = vadd.f32 %v1558, %v1654
  %v1656 = vpop.f32.mrf.mxu0
  %v1657 = vadd.f32 %v1560, %v1656
  %1658 = vmatmul.bf16.gmra.mxu0 %v1447
  %v1659 = vpop.f32.mrf.mxu0
  %v1660 = vadd.f32 %v1563, %v1659
  %v1661 = vpop.f32.mrf.mxu0
  %v1662 = vadd.f32 %v1565, %v1661
  %1663 = vmatmul.bf16.gmra.mxu0 %v1448
  %v1664 = vpop.f32.mrf.mxu0
  %v1665 = vadd.f32 %v1568, %v1664
  %v1666 = vpop.f32.mrf.mxu0
  %v1667 = vadd.f32 %v1570, %v1666
  %1668 = vmatmul.bf16.gmra.mxu0 %v1449
  %v1669 = vpop.f32.mrf.mxu0
  %v1670 = vadd.f32 %v1573, %v1669
  %v1671 = vpop.f32.mrf.mxu0
  %v1672 = vadd.f32 %v1575, %v1671
  %1673 = vmatmul.bf16.gmra.mxu0 %v1450
  %v1674 = vpop.f32.mrf.mxu0
  %v1675 = vadd.f32 %v1578, %v1674
  %v1676 = vpop.f32.mrf.mxu0
  %v1677 = vadd.f32 %v1580, %v1676
  %1678 = vdwg.mxu0
  %v1679 = vpack.c.bf16 %v1642, %v1640
  %v1680 = vpack.c.bf16 %v1647, %v1645
  %v1681 = vpack.c.bf16 %v1652, %v1650
  %v1682 = vpack.c.bf16 %v1657, %v1655
  %v1683 = vpack.c.bf16 %v1662, %v1660
  %v1684 = vpack.c.bf16 %v1667, %v1665
  %v1685 = vpack.c.bf16 %v1672, %v1670
  %v1686 = vpack.c.bf16 %v1677, %v1675
  %s1687 = scalar_lea.vmem %s2, 448
  %v1688 = vld [vmem:[%s1687] sm:$0xf]
  %v1689 = vld [vmem:[%s1687 + $0x4] sm:$0xf]
  %v1690 = vld [vmem:[%s1687 + $0x8] sm:$0xf]
  %v1691 = vld [vmem:[%s1687 + $0xc] sm:$0xf]
  %v1692 = vld [vmem:[%s1687 + $0x10] sm:$0xf]
  %v1693 = vld [vmem:[%s1687 + $0x14] sm:$0xf]
  %v1694 = vld [vmem:[%s1687 + $0x18] sm:$0xf]
  %v1695 = vld [vmem:[%s1687 + $0x1c] sm:$0xf]
  %v1696 = vld [vmem:[%s1687 + $0x20] sm:$0xf]
  %v1697 = vld [vmem:[%s1687 + $0x24] sm:$0xf]
  %v1698 = vld [vmem:[%s1687 + $0x28] sm:$0xf]
  %v1699 = vld [vmem:[%s1687 + $0x2c] sm:$0xf]
  %v1700 = vld [vmem:[%s1687 + $0x30] sm:$0xf]
  %v1701 = vld [vmem:[%s1687 + $0x34] sm:$0xf]
  %v1702 = vld [vmem:[%s1687 + $0x38] sm:$0xf]
  %v1703 = vld [vmem:[%s1687 + $0x3c] sm:$0xf]
  %v1704 = vperm.slane %v37, 5
  %v1721 = vunpack.c.l.b16 %v1688
  %v1722 = vunpack.c.l.b16 %v1689
  %v1723 = vunpack.c.l.b16 %v1690
  %v1724 = vunpack.c.l.b16 %v1691
  %v1725 = vunpack.c.l.b16 %v1692
  %v1726 = vunpack.c.l.b16 %v1693
  %v1727 = vunpack.c.l.b16 %v1694
  %v1728 = vunpack.c.l.b16 %v1695
  %v1729 = vunpack.c.l.b16 %v1696
  %v1730 = vunpack.c.l.b16 %v1697
  %v1731 = vunpack.c.l.b16 %v1698
  %v1732 = vunpack.c.l.b16 %v1699
  %v1733 = vunpack.c.l.b16 %v1700
  %v1734 = vunpack.c.l.b16 %v1701
  %v1735 = vunpack.c.l.b16 %v1702
  %v1736 = vunpack.c.l.b16 %v1703
  %v1737 = vpack.c.b16 %v1722, %v1721
  %v1738 = vpack.c.b16 %v1724, %v1723
  %v1739 = vpack.c.b16 %v1726, %v1725
  %v1740 = vpack.c.b16 %v1728, %v1727
  %v1741 = vpack.c.b16 %v1730, %v1729
  %v1742 = vpack.c.b16 %v1732, %v1731
  %v1743 = vpack.c.b16 %v1734, %v1733
  %v1744 = vpack.c.b16 %v1736, %v1735
  %1753 = vmatpush.bf16.msra.mxu0 %v1744
  %1754 = vmatpush.bf16.msra.mxu0 %v1743
  %1755 = vmatpush.bf16.msra.mxu0 %v1742
  %1756 = vmatpush.bf16.msra.mxu0 %v1741
  %1757 = vmatpush.bf16.msra.mxu0 %v1740
  %1758 = vmatpush.bf16.msra.mxu0 %v1739
  %1759 = vmatpush.bf16.msra.mxu0 %v1738
  %1760 = vmatpush.bf16.msra.mxu0 %v1737
  %1761 = vmatmul.bf16.gmra.mxu0 %v1679
  %v1762 = vpop.f32.mrf.mxu0
  %v1763 = vadd.f32 %v1704, %v1762
  %v1764 = vpop.f32.mrf.mxu0
  %v1765 = vadd.f32 %v1704, %v1764
  %1766 = vmatmul.bf16.gmra.mxu0 %v1680
  %v1767 = vpop.f32.mrf.mxu0
  %v1768 = vadd.f32 %v1704, %v1767
  %v1769 = vpop.f32.mrf.mxu0
  %v1770 = vadd.f32 %v1704, %v1769
  %1771 = vmatmul.bf16.gmra.mxu0 %v1681
  %v1772 = vpop.f32.mrf.mxu0
  %v1773 = vadd.f32 %v1704, %v1772
  %v1774 = vpop.f32.mrf.mxu0
  %v1775 = vadd.f32 %v1704, %v1774
  %1776 = vmatmul.bf16.gmra.mxu0 %v1682
  %v1777 = vpop.f32.mrf.mxu0
  %v1778 = vadd.f32 %v1704, %v1777
  %v1779 = vpop.f32.mrf.mxu0
  %v1780 = vadd.f32 %v1704, %v1779
  %1781 = vmatmul.bf16.gmra.mxu0 %v1683
  %v1782 = vpop.f32.mrf.mxu0
  %v1783 = vadd.f32 %v1704, %v1782
  %v1784 = vpop.f32.mrf.mxu0
  %v1785 = vadd.f32 %v1704, %v1784
  %1786 = vmatmul.bf16.gmra.mxu0 %v1684
  %v1787 = vpop.f32.mrf.mxu0
  %v1788 = vadd.f32 %v1704, %v1787
  %v1789 = vpop.f32.mrf.mxu0
  %v1790 = vadd.f32 %v1704, %v1789
  %1791 = vmatmul.bf16.gmra.mxu0 %v1685
  %v1792 = vpop.f32.mrf.mxu0
  %v1793 = vadd.f32 %v1704, %v1792
  %v1794 = vpop.f32.mrf.mxu0
  %v1795 = vadd.f32 %v1704, %v1794
  %1796 = vmatmul.bf16.gmra.mxu0 %v1686
  %v1797 = vpop.f32.mrf.mxu0
  %v1798 = vadd.f32 %v1704, %v1797
  %v1799 = vpop.f32.mrf.mxu0
  %v1800 = vadd.f32 %v1704, %v1799
  %1801 = vdwg.mxu0
  %v1802 = vmax.f32 %v1763, 0.0
  %v1803 = vmax.f32 %v1765, 0.0
  %v1804 = vmax.f32 %v1768, 0.0
  %v1805 = vmax.f32 %v1770, 0.0
  %v1806 = vmax.f32 %v1773, 0.0
  %v1807 = vmax.f32 %v1775, 0.0
  %v1808 = vmax.f32 %v1778, 0.0
  %v1809 = vmax.f32 %v1780, 0.0
  %v1810 = vmax.f32 %v1783, 0.0
  %v1811 = vmax.f32 %v1785, 0.0
  %v1812 = vmax.f32 %v1788, 0.0
  %v1813 = vmax.f32 %v1790, 0.0
  %v1814 = vmax.f32 %v1793, 0.0
  %v1815 = vmax.f32 %v1795, 0.0
  %v1816 = vmax.f32 %v1798, 0.0
  %v1817 = vmax.f32 %v1800, 0.0
  %v1818 = vpack.c.bf16 %v1803, %v1802
  %v1819 = vpack.c.bf16 %v1805, %v1804
  %v1820 = vpack.c.bf16 %v1807, %v1806
  %v1821 = vpack.c.bf16 %v1809, %v1808
  %v1822 = vpack.c.bf16 %v1811, %v1810
  %v1823 = vpack.c.bf16 %v1813, %v1812
  %v1824 = vpack.c.bf16 %v1815, %v1814
  %v1825 = vpack.c.bf16 %v1817, %v1816
  %s1826 = scalar_lea.vmem %s2, 512
  %v1827 = vld [vmem:[%s1826] sm:$0xf]
  %v1828 = vld [vmem:[%s1826 + $0x4] sm:$0xf]
  %v1829 = vld [vmem:[%s1826 + $0x8] sm:$0xf]
  %v1830 = vld [vmem:[%s1826 + $0xc] sm:$0xf]
  %v1831 = vld [vmem:[%s1826 + $0x10] sm:$0xf]
  %v1832 = vld [vmem:[%s1826 + $0x14] sm:$0xf]
  %v1833 = vld [vmem:[%s1826 + $0x18] sm:$0xf]
  %v1834 = vld [vmem:[%s1826 + $0x1c] sm:$0xf]
  %v1835 = vld [vmem:[%s1826 + $0x20] sm:$0xf]
  %v1836 = vld [vmem:[%s1826 + $0x24] sm:$0xf]
  %v1837 = vld [vmem:[%s1826 + $0x28] sm:$0xf]
  %v1838 = vld [vmem:[%s1826 + $0x2c] sm:$0xf]
  %v1839 = vld [vmem:[%s1826 + $0x30] sm:$0xf]
  %v1840 = vld [vmem:[%s1826 + $0x34] sm:$0xf]
  %v1841 = vld [vmem:[%s1826 + $0x38] sm:$0xf]
  %v1842 = vld [vmem:[%s1826 + $0x3c] sm:$0xf]
  %v1843 = vperm.slane %v37, 6
  %v1860 = vunpack.c.l.b16 %v1827
  %v1861 = vunpack.c.l.b16 %v1828
  %v1862 = vunpack.c.l.b16 %v1829
  %v1863 = vunpack.c.l.b16 %v1830
  %v1864 = vunpack.c.l.b16 %v1831
  %v1865 = vunpack.c.l.b16 %v1832
  %v1866 = vunpack.c.l.b16 %v1833
  %v1867 = vunpack.c.l.b16 %v1834
  %v1868 = vunpack.c.l.b16 %v1835
  %v1869 = vunpack.c.l.b16 %v1836
  %v1870 = vunpack.c.l.b16 %v1837
  %v1871 = vunpack.c.l.b16 %v1838
  %v1872 = vunpack.c.l.b16 %v1839
  %v1873 = vunpack.c.l.b16 %v1840
  %v1874 = vunpack.c.l.b16 %v1841
  %v1875 = vunpack.c.l.b16 %v1842
  %v1876 = vpack.c.b16 %v1861, %v1860
  %v1877 = vpack.c.b16 %v1863, %v1862
  %v1878 = vpack.c.b16 %v1865, %v1864
  %v1879 = vpack.c.b16 %v1867, %v1866
  %v1880 = vpack.c.b16 %v1869, %v1868
  %v1881 = vpack.c.b16 %v1871, %v1870
  %v1882 = vpack.c.b16 %v1873, %v1872
  %v1883 = vpack.c.b16 %v1875, %v1874
  %1892 = vmatpush.bf16.msra.mxu0 %v1883
  %1893 = vmatpush.bf16.msra.mxu0 %v1882
  %1894 = vmatpush.bf16.msra.mxu0 %v1881
  %1895 = vmatpush.bf16.msra.mxu0 %v1880
  %1896 = vmatpush.bf16.msra.mxu0 %v1879
  %1897 = vmatpush.bf16.msra.mxu0 %v1878
  %1898 = vmatpush.bf16.msra.mxu0 %v1877
  %1899 = vmatpush.bf16.msra.mxu0 %v1876
  %1900 = vmatmul.bf16.gmra.mxu0 %v1818
  %v1901 = vpop.f32.mrf.mxu0
  %v1902 = vadd.f32 %v1843, %v1901
  %v1903 = vpop.f32.mrf.mxu0
  %v1904 = vadd.f32 %v1843, %v1903
  %1905 = vmatmul.bf16.gmra.mxu0 %v1819
  %v1906 = vpop.f32.mrf.mxu0
  %v1907 = vadd.f32 %v1843, %v1906
  %v1908 = vpop.f32.mrf.mxu0
  %v1909 = vadd.f32 %v1843, %v1908
  %1910 = vmatmul.bf16.gmra.mxu0 %v1820
  %v1911 = vpop.f32.mrf.mxu0
  %v1912 = vadd.f32 %v1843, %v1911
  %v1913 = vpop.f32.mrf.mxu0
  %v1914 = vadd.f32 %v1843, %v1913
  %1915 = vmatmul.bf16.gmra.mxu0 %v1821
  %v1916 = vpop.f32.mrf.mxu0
  %v1917 = vadd.f32 %v1843, %v1916
  %v1918 = vpop.f32.mrf.mxu0
  %v1919 = vadd.f32 %v1843, %v1918
  %1920 = vmatmul.bf16.gmra.mxu0 %v1822
  %v1921 = vpop.f32.mrf.mxu0
  %v1922 = vadd.f32 %v1843, %v1921
  %v1923 = vpop.f32.mrf.mxu0
  %v1924 = vadd.f32 %v1843, %v1923
  %1925 = vmatmul.bf16.gmra.mxu0 %v1823
  %v1926 = vpop.f32.mrf.mxu0
  %v1927 = vadd.f32 %v1843, %v1926
  %v1928 = vpop.f32.mrf.mxu0
  %v1929 = vadd.f32 %v1843, %v1928
  %1930 = vmatmul.bf16.gmra.mxu0 %v1824
  %v1931 = vpop.f32.mrf.mxu0
  %v1932 = vadd.f32 %v1843, %v1931
  %v1933 = vpop.f32.mrf.mxu0
  %v1934 = vadd.f32 %v1843, %v1933
  %1935 = vmatmul.bf16.gmra.mxu0 %v1825
  %v1936 = vpop.f32.mrf.mxu0
  %v1937 = vadd.f32 %v1843, %v1936
  %v1938 = vpop.f32.mrf.mxu0
  %v1939 = vadd.f32 %v1843, %v1938
  %1940 = vdwg.mxu0
  %v1941 = vmax.f32 %v1902, 0.0
  %v1942 = vmax.f32 %v1904, 0.0
  %v1943 = vmax.f32 %v1907, 0.0
  %v1944 = vmax.f32 %v1909, 0.0
  %v1945 = vmax.f32 %v1912, 0.0
  %v1946 = vmax.f32 %v1914, 0.0
  %v1947 = vmax.f32 %v1917, 0.0
  %v1948 = vmax.f32 %v1919, 0.0
  %v1949 = vmax.f32 %v1922, 0.0
  %v1950 = vmax.f32 %v1924, 0.0
  %v1951 = vmax.f32 %v1927, 0.0
  %v1952 = vmax.f32 %v1929, 0.0
  %v1953 = vmax.f32 %v1932, 0.0
  %v1954 = vmax.f32 %v1934, 0.0
  %v1955 = vmax.f32 %v1937, 0.0
  %v1956 = vmax.f32 %v1939, 0.0
  %v1957 = vpack.c.bf16 %v1942, %v1941
  %v1958 = vpack.c.bf16 %v1944, %v1943
  %v1959 = vpack.c.bf16 %v1946, %v1945
  %v1960 = vpack.c.bf16 %v1948, %v1947
  %v1961 = vpack.c.bf16 %v1950, %v1949
  %v1962 = vpack.c.bf16 %v1952, %v1951
  %v1963 = vpack.c.bf16 %v1954, %v1953
  %v1964 = vpack.c.bf16 %v1956, %v1955
  %s1965 = scalar_lea.vmem %s2, 576
  %v1966 = vld [vmem:[%s1965] sm:$0xf]
  %v1967 = vld [vmem:[%s1965 + $0x4] sm:$0xf]
  %v1968 = vld [vmem:[%s1965 + $0x8] sm:$0xf]
  %v1969 = vld [vmem:[%s1965 + $0xc] sm:$0xf]
  %v1970 = vld [vmem:[%s1965 + $0x10] sm:$0xf]
  %v1971 = vld [vmem:[%s1965 + $0x14] sm:$0xf]
  %v1972 = vld [vmem:[%s1965 + $0x18] sm:$0xf]
  %v1973 = vld [vmem:[%s1965 + $0x1c] sm:$0xf]
  %v1974 = vld [vmem:[%s1965 + $0x20] sm:$0xf]
  %v1975 = vld [vmem:[%s1965 + $0x24] sm:$0xf]
  %v1976 = vld [vmem:[%s1965 + $0x28] sm:$0xf]
  %v1977 = vld [vmem:[%s1965 + $0x2c] sm:$0xf]
  %v1978 = vld [vmem:[%s1965 + $0x30] sm:$0xf]
  %v1979 = vld [vmem:[%s1965 + $0x34] sm:$0xf]
  %v1980 = vld [vmem:[%s1965 + $0x38] sm:$0xf]
  %v1981 = vld [vmem:[%s1965 + $0x3c] sm:$0xf]
  %v1982 = vperm.slane %v38, 0
  %v1999 = vunpack.c.l.b16 %v1966
  %v2000 = vunpack.c.l.b16 %v1967
  %v2001 = vunpack.c.l.b16 %v1968
  %v2002 = vunpack.c.l.b16 %v1969
  %v2003 = vunpack.c.l.b16 %v1970
  %v2004 = vunpack.c.l.b16 %v1971
  %v2005 = vunpack.c.l.b16 %v1972
  %v2006 = vunpack.c.l.b16 %v1973
  %v2007 = vunpack.c.l.b16 %v1974
  %v2008 = vunpack.c.l.b16 %v1975
  %v2009 = vunpack.c.l.b16 %v1976
  %v2010 = vunpack.c.l.b16 %v1977
  %v2011 = vunpack.c.l.b16 %v1978
  %v2012 = vunpack.c.l.b16 %v1979
  %v2013 = vunpack.c.l.b16 %v1980
  %v2014 = vunpack.c.l.b16 %v1981
  %v2015 = vpack.c.b16 %v2000, %v1999
  %v2016 = vpack.c.b16 %v2002, %v2001
  %v2017 = vpack.c.b16 %v2004, %v2003
  %v2018 = vpack.c.b16 %v2006, %v2005
  %v2019 = vpack.c.b16 %v2008, %v2007
  %v2020 = vpack.c.b16 %v2010, %v2009
  %v2021 = vpack.c.b16 %v2012, %v2011
  %v2022 = vpack.c.b16 %v2014, %v2013
  %2031 = vmatpush.bf16.msra.mxu0 %v2022
  %2032 = vmatpush.bf16.msra.mxu0 %v2021
  %2033 = vmatpush.bf16.msra.mxu0 %v2020
  %2034 = vmatpush.bf16.msra.mxu0 %v2019
  %2035 = vmatpush.bf16.msra.mxu0 %v2018
  %2036 = vmatpush.bf16.msra.mxu0 %v2017
  %2037 = vmatpush.bf16.msra.mxu0 %v2016
  %2038 = vmatpush.bf16.msra.mxu0 %v2015
  %2039 = vmatmul.bf16.gmra.mxu0 %v1957
  %v2040 = vpop.f32.mrf.mxu0
  %v2041 = vadd.f32 %v1982, %v2040
  %v2042 = vpop.f32.mrf.mxu0
  %v2043 = vadd.f32 %v1982, %v2042
  %2044 = vmatmul.bf16.gmra.mxu0 %v1958
  %v2045 = vpop.f32.mrf.mxu0
  %v2046 = vadd.f32 %v1982, %v2045
  %v2047 = vpop.f32.mrf.mxu0
  %v2048 = vadd.f32 %v1982, %v2047
  %2049 = vmatmul.bf16.gmra.mxu0 %v1959
  %v2050 = vpop.f32.mrf.mxu0
  %v2051 = vadd.f32 %v1982, %v2050
  %v2052 = vpop.f32.mrf.mxu0
  %v2053 = vadd.f32 %v1982, %v2052
  %2054 = vmatmul.bf16.gmra.mxu0 %v1960
  %v2055 = vpop.f32.mrf.mxu0
  %v2056 = vadd.f32 %v1982, %v2055
  %v2057 = vpop.f32.mrf.mxu0
  %v2058 = vadd.f32 %v1982, %v2057
  %2059 = vmatmul.bf16.gmra.mxu0 %v1961
  %v2060 = vpop.f32.mrf.mxu0
  %v2061 = vadd.f32 %v1982, %v2060
  %v2062 = vpop.f32.mrf.mxu0
  %v2063 = vadd.f32 %v1982, %v2062
  %2064 = vmatmul.bf16.gmra.mxu0 %v1962
  %v2065 = vpop.f32.mrf.mxu0
  %v2066 = vadd.f32 %v1982, %v2065
  %v2067 = vpop.f32.mrf.mxu0
  %v2068 = vadd.f32 %v1982, %v2067
  %2069 = vmatmul.bf16.gmra.mxu0 %v1963
  %v2070 = vpop.f32.mrf.mxu0
  %v2071 = vadd.f32 %v1982, %v2070
  %v2072 = vpop.f32.mrf.mxu0
  %v2073 = vadd.f32 %v1982, %v2072
  %2074 = vmatmul.bf16.gmra.mxu0 %v1964
  %v2075 = vpop.f32.mrf.mxu0
  %v2076 = vadd.f32 %v1982, %v2075
  %v2077 = vpop.f32.mrf.mxu0
  %v2078 = vadd.f32 %v1982, %v2077
  %2079 = vdwg.mxu0
  %vm2080 = vcmp.eq.s32.totalorder %v1106, 3
  %v2081 = vcvt.s32.f32 %v1184
  %v2082 = vcvt.s32.f32 %v1198
  %v2083 = vcvt.s32.f32 %v1212
  %v2084 = vcvt.s32.f32 %v1226
  %v2085 = vcvt.s32.f32 %v1240
  %v2086 = vcvt.s32.f32 %v1254
  %v2087 = vcvt.s32.f32 %v1268
  %v2088 = vcvt.s32.f32 %v1282
  %v2089 = vcvt.s32.f32 %v1296
  %v2090 = vcvt.s32.f32 %v1310
  %v2091 = vcvt.s32.f32 %v1324
  %v2092 = vcvt.s32.f32 %v1338
  %v2093 = vcvt.s32.f32 %v1352
  %v2094 = vcvt.s32.f32 %v1366
  %v2095 = vcvt.s32.f32 %v1380
  %v2096 = vcvt.s32.f32 %v1394
  %v2097 = vsel %vm2080, %v2081, %v2041
  %v2098 = vsel %vm2080, %v2082, %v2043
  %v2099 = vsel %vm2080, %v2083, %v2046
  %v2100 = vsel %vm2080, %v2084, %v2048
  %v2101 = vsel %vm2080, %v2085, %v2051
  %v2102 = vsel %vm2080, %v2086, %v2053
  %v2103 = vsel %vm2080, %v2087, %v2056
  %v2104 = vsel %vm2080, %v2088, %v2058
  %v2105 = vsel %vm2080, %v2089, %v2061
  %v2106 = vsel %vm2080, %v2090, %v2063
  %v2107 = vsel %vm2080, %v2091, %v2066
  %v2108 = vsel %vm2080, %v2092, %v2068
  %v2109 = vsel %vm2080, %v2093, %v2071
  %v2110 = vsel %vm2080, %v2094, %v2073
  %v2111 = vsel %vm2080, %v2095, %v2076
  %v2112 = vsel %vm2080, %v2096, %v2078
  %vm2113 = vcmask 64512
  %2114 = vst.msk [vmem:[%s5] sm:$0xff] %vm2113, %v2097
  %2115 = vst.msk [vmem:[%s5 + $0x8] sm:$0xff] %vm2113, %v2098
  %2116 = vst.msk [vmem:[%s5 + $0x10] sm:$0xff] %vm2113, %v2099
  %2117 = vst.msk [vmem:[%s5 + $0x18] sm:$0xff] %vm2113, %v2100
  %2118 = vst.msk [vmem:[%s5 + $0x20] sm:$0xff] %vm2113, %v2101
  %2119 = vst.msk [vmem:[%s5 + $0x28] sm:$0xff] %vm2113, %v2102
  %2120 = vst.msk [vmem:[%s5 + $0x30] sm:$0xff] %vm2113, %v2103
  %2121 = vst.msk [vmem:[%s5 + $0x38] sm:$0xff] %vm2113, %v2104
  %2122 = vst.msk [vmem:[%s5 + $0x40] sm:$0xff] %vm2113, %v2105
  %2123 = vst.msk [vmem:[%s5 + $0x48] sm:$0xff] %vm2113, %v2106
  %2124 = vst.msk [vmem:[%s5 + $0x50] sm:$0xff] %vm2113, %v2107
  %2125 = vst.msk [vmem:[%s5 + $0x58] sm:$0xff] %vm2113, %v2108
  %2126 = vst.msk [vmem:[%s5 + $0x60] sm:$0xff] %vm2113, %v2109
  %2127 = vst.msk [vmem:[%s5 + $0x68] sm:$0xff] %vm2113, %v2110
  %2128 = vst.msk [vmem:[%s5 + $0x70] sm:$0xff] %vm2113, %v2111
  %2129 = vst.msk [vmem:[%s5 + $0x78] sm:$0xff] %vm2113, %v2112
  %v2130 = vsub.f32 %v1640, %v918
  %v2131 = vsub.f32 %v1642, %v919
  %v2132 = vsub.f32 %v1645, %v920
  %v2133 = vsub.f32 %v1647, %v921
  %v2134 = vsub.f32 %v1650, %v922
  %v2135 = vsub.f32 %v1652, %v923
  %v2136 = vsub.f32 %v1655, %v924
  %v2137 = vsub.f32 %v1657, %v925
  %v2138 = vsub.f32 %v1660, %v926
  %v2139 = vsub.f32 %v1662, %v927
  %v2140 = vsub.f32 %v1665, %v928
  %v2141 = vsub.f32 %v1667, %v929
  %v2142 = vsub.f32 %v1670, %v930
  %v2143 = vsub.f32 %v1672, %v931
  %v2144 = vsub.f32 %v1675, %v932
  %v2145 = vsub.f32 %v1677, %v933
  %v2146 = vmul.f32 %v2130, %v2130
  %v2147 = vmul.f32 %v2131, %v2131
  %v2148 = vmul.f32 %v2132, %v2132
  %v2149 = vmul.f32 %v2133, %v2133
  %v2150 = vmul.f32 %v2134, %v2134
  %v2151 = vmul.f32 %v2135, %v2135
  %v2152 = vmul.f32 %v2136, %v2136
  %v2153 = vmul.f32 %v2137, %v2137
  %v2154 = vmul.f32 %v2138, %v2138
  %v2155 = vmul.f32 %v2139, %v2139
  %v2156 = vmul.f32 %v2140, %v2140
  %v2157 = vmul.f32 %v2141, %v2141
  %v2158 = vmul.f32 %v2142, %v2142
  %v2159 = vmul.f32 %v2143, %v2143
  %v2160 = vmul.f32 %v2144, %v2144
  %v2161 = vmul.f32 %v2145, %v2145
  %2162 = vset.pattern.permute.xlu0 3
  %2163 = vperm.xlu0 %2162, %v20
  %v2164 = vpop.permute.xlu0 %2163
  %2166 = vset.pattern.permute.xlu0 3
  %2167 = vperm.xlu0 %2166, %v21
  %v2168 = vpop.permute.xlu0 %2167
  %2170 = vset.pattern.permute.xlu0 3
  %2171 = vperm.xlu0 %2170, %v22
  %v2172 = vpop.permute.xlu0 %2171
  %2174 = vset.pattern.permute.xlu0 3
  %2175 = vperm.xlu0 %2174, %v23
  %v2176 = vpop.permute.xlu0 %2175
  %2178 = vset.pattern.permute.xlu0 3
  %2179 = vperm.xlu0 %2178, %v24
  %v2180 = vpop.permute.xlu0 %2179
  %2182 = vset.pattern.permute.xlu0 3
  %2183 = vperm.xlu0 %2182, %v25
  %v2184 = vpop.permute.xlu0 %2183
  %2186 = vset.pattern.permute.xlu0 3
  %2187 = vperm.xlu0 %2186, %v26
  %v2188 = vpop.permute.xlu0 %2187
  %2190 = vset.pattern.permute.xlu0 3
  %2191 = vperm.xlu0 %2190, %v27
  %v2192 = vpop.permute.xlu0 %2191
  %2194 = vset.pattern.permute.xlu0 3
  %2195 = vperm.xlu0 %2194, %v28
  %v2196 = vpop.permute.xlu0 %2195
  %2198 = vset.pattern.permute.xlu0 3
  %2199 = vperm.xlu0 %2198, %v29
  %v2200 = vpop.permute.xlu0 %2199
  %2202 = vset.pattern.permute.xlu0 3
  %2203 = vperm.xlu0 %2202, %v30
  %v2204 = vpop.permute.xlu0 %2203
  %2206 = vset.pattern.permute.xlu0 3
  %2207 = vperm.xlu0 %2206, %v31
  %v2208 = vpop.permute.xlu0 %2207
  %2210 = vset.pattern.permute.xlu0 3
  %2211 = vperm.xlu0 %2210, %v32
  %v2212 = vpop.permute.xlu0 %2211
  %2214 = vset.pattern.permute.xlu0 3
  %2215 = vperm.xlu0 %2214, %v33
  %v2216 = vpop.permute.xlu0 %2215
  %2218 = vset.pattern.permute.xlu0 3
  %2219 = vperm.xlu0 %2218, %v34
  %v2220 = vpop.permute.xlu0 %2219
  %2222 = vset.pattern.permute.xlu0 3
  %2223 = vperm.xlu0 %2222, %v35
  %v2224 = vpop.permute.xlu0 %2223
  %v2226 = vmul.f32 %v2146, %v2164
  %v2227 = vmul.f32 %v2147, %v2168
  %v2228 = vmul.f32 %v2148, %v2172
  %v2229 = vmul.f32 %v2149, %v2176
  %v2230 = vmul.f32 %v2150, %v2180
  %v2231 = vmul.f32 %v2151, %v2184
  %v2232 = vmul.f32 %v2152, %v2188
  %v2233 = vmul.f32 %v2153, %v2192
  %v2234 = vmul.f32 %v2154, %v2196
  %v2235 = vmul.f32 %v2155, %v2200
  %v2236 = vmul.f32 %v2156, %v2204
  %v2237 = vmul.f32 %v2157, %v2208
  %v2238 = vmul.f32 %v2158, %v2212
  %v2239 = vmul.f32 %v2159, %v2216
  %v2240 = vmul.f32 %v2160, %v2220
  %v2241 = vmul.f32 %v2161, %v2224
  %v2242 = vadd.f32 %v2226, %v2227
  %v2243 = vadd.f32 %v2242, %v2228
  %v2244 = vadd.f32 %v2243, %v2229
  %v2245 = vadd.f32 %v2244, %v2230
  %v2246 = vadd.f32 %v2245, %v2231
  %v2247 = vadd.f32 %v2246, %v2232
  %v2248 = vadd.f32 %v2247, %v2233
  %v2249 = vadd.f32 %v2248, %v2234
  %v2250 = vadd.f32 %v2249, %v2235
  %v2251 = vadd.f32 %v2250, %v2236
  %v2252 = vadd.f32 %v2251, %v2237
  %v2253 = vadd.f32 %v2252, %v2238
  %v2254 = vadd.f32 %v2253, %v2239
  %v2255 = vadd.f32 %v2254, %v2240
  %v2256 = vadd.f32 %v2255, %v2241
  %2257 = vadd.xlane.f32.xlu0 %v2256
  %v2258 = vpop.xlane.xlu0 %2257
  %v2259 = vrot.slane %v2258, 4
  %v2260 = vadd.f32 %v2258, %v2259
  %v2261 = vrot.slane %v2260, 2
  %v2262 = vadd.f32 %v2260, %v2261
  %v2263 = vrot.slane %v2262, 1
  %v2264 = vadd.f32 %v2262, %v2263
  %s2265 = vtos %v2264
  %2266 = vrot.lane.b32.xlu0 %v20, 125
  %v2267 = vpop.permute.xlu0 %2266
  %2268 = vrot.lane.b32.xlu0 %v21, 125
  %v2269 = vpop.permute.xlu0 %2268
  %2270 = vrot.lane.b32.xlu0 %v22, 125
  %v2271 = vpop.permute.xlu0 %2270
  %2272 = vrot.lane.b32.xlu0 %v23, 125
  %v2273 = vpop.permute.xlu0 %2272
  %2274 = vrot.lane.b32.xlu0 %v24, 125
  %v2275 = vpop.permute.xlu0 %2274
  %2276 = vrot.lane.b32.xlu0 %v25, 125
  %v2277 = vpop.permute.xlu0 %2276
  %2278 = vrot.lane.b32.xlu0 %v26, 125
  %v2279 = vpop.permute.xlu0 %2278
  %2280 = vrot.lane.b32.xlu0 %v27, 125
  %v2281 = vpop.permute.xlu0 %2280
  %2282 = vrot.lane.b32.xlu0 %v28, 125
  %v2283 = vpop.permute.xlu0 %2282
  %2284 = vrot.lane.b32.xlu0 %v29, 125
  %v2285 = vpop.permute.xlu0 %2284
  %2286 = vrot.lane.b32.xlu0 %v30, 125
  %v2287 = vpop.permute.xlu0 %2286
  %2288 = vrot.lane.b32.xlu0 %v31, 125
  %v2289 = vpop.permute.xlu0 %2288
  %2290 = vrot.lane.b32.xlu0 %v32, 125
  %v2291 = vpop.permute.xlu0 %2290
  %2292 = vrot.lane.b32.xlu0 %v33, 125
  %v2293 = vpop.permute.xlu0 %2292
  %2294 = vrot.lane.b32.xlu0 %v34, 125
  %v2295 = vpop.permute.xlu0 %2294
  %2296 = vrot.lane.b32.xlu0 %v35, 125
  %v2297 = vpop.permute.xlu0 %2296
  %vm2314 = vcmask 7168
  %v2315 = vsel %vm2314, %v2267, 0.0
  %v2316 = vsel %vm2314, %v2269, 0.0
  %v2317 = vadd.f32 %v2315, %v2316
  %v2318 = vsel %vm2314, %v2271, 0.0
  %v2319 = vadd.f32 %v2317, %v2318
  %v2320 = vsel %vm2314, %v2273, 0.0
  %v2321 = vadd.f32 %v2319, %v2320
  %v2322 = vsel %vm2314, %v2275, 0.0
  %v2323 = vadd.f32 %v2321, %v2322
  %v2324 = vsel %vm2314, %v2277, 0.0
  %v2325 = vadd.f32 %v2323, %v2324
  %v2326 = vsel %vm2314, %v2279, 0.0
  %v2327 = vadd.f32 %v2325, %v2326
  %v2328 = vsel %vm2314, %v2281, 0.0
  %v2329 = vadd.f32 %v2327, %v2328
  %v2330 = vsel %vm2314, %v2283, 0.0
  %v2331 = vadd.f32 %v2329, %v2330
  %v2332 = vsel %vm2314, %v2285, 0.0
  %v2333 = vadd.f32 %v2331, %v2332
  %v2334 = vsel %vm2314, %v2287, 0.0
  %v2335 = vadd.f32 %v2333, %v2334
  %v2336 = vsel %vm2314, %v2289, 0.0
  %v2337 = vadd.f32 %v2335, %v2336
  %v2338 = vsel %vm2314, %v2291, 0.0
  %v2339 = vadd.f32 %v2337, %v2338
  %v2340 = vsel %vm2314, %v2293, 0.0
  %v2341 = vadd.f32 %v2339, %v2340
  %v2342 = vsel %vm2314, %v2295, 0.0
  %v2343 = vadd.f32 %v2341, %v2342
  %v2344 = vsel %vm2314, %v2297, 0.0
  %v2345 = vadd.f32 %v2343, %v2344
  %2346 = vadd.xlane.f32.xlu0 %v2345
  %v2347 = vpop.xlane.xlu0 %2346
  %v2348 = vrot.slane %v2347, 4
  %v2349 = vadd.f32 %v2347, %v2348
  %v2350 = vrot.slane %v2349, 2
  %v2351 = vadd.f32 %v2349, %v2350
  %v2352 = vrot.slane %v2351, 1
  %v2353 = vadd.f32 %v2351, %v2352
  %s2354 = vtos %v2353
  %s2355 = smul.u32 0, 128
  %v2356 = vlaneseq
  %v2357 = vshrl.u32 %v2356, 7
  %v2358 = vadd.s32 %v2357, 8
  %v2359 = vadd.s32 %v2357, 16
  %v2360 = vadd.s32 %v2357, 24
  %v2361 = vadd.s32 %v2357, 32
  %v2362 = vadd.s32 %v2357, 40
  %v2363 = vadd.s32 %v2357, 48
  %v2364 = vadd.s32 %v2357, 56
  %v2365 = vadd.s32 %v2357, 64
  %v2366 = vadd.s32 %v2357, 72
  %v2367 = vadd.s32 %v2357, 80
  %v2368 = vadd.s32 %v2357, 88
  %v2369 = vadd.s32 %v2357, 96
  %v2370 = vadd.s32 %v2357, 104
  %v2371 = vadd.s32 %v2357, 112
  %v2372 = vadd.s32 %v2357, 120
  %v2373 = vstv %s2355
  %v2374 = vadd.s32 %v2373, %v2357
  %v2375 = vadd.s32 %v2373, %v2358
  %v2376 = vadd.s32 %v2373, %v2359
  %v2377 = vadd.s32 %v2373, %v2360
  %v2378 = vadd.s32 %v2373, %v2361
  %v2379 = vadd.s32 %v2373, %v2362
  %v2380 = vadd.s32 %v2373, %v2363
  %v2381 = vadd.s32 %v2373, %v2364
  %v2382 = vadd.s32 %v2373, %v2365
  %v2383 = vadd.s32 %v2373, %v2366
  %v2384 = vadd.s32 %v2373, %v2367
  %v2385 = vadd.s32 %v2373, %v2368
  %v2386 = vadd.s32 %v2373, %v2369
  %v2387 = vadd.s32 %v2373, %v2370
  %v2388 = vadd.s32 %v2373, %v2371
  %v2389 = vadd.s32 %v2373, %v2372
  %vm2390 = vcmp.lt.s32.totalorder %v2374, 16
  %vm2391 = vcmp.lt.s32.totalorder %v2375, 16
  %vm2392 = vcmp.lt.s32.totalorder %v2376, 16
  %vm2393 = vcmp.lt.s32.totalorder %v2377, 16
  %vm2394 = vcmp.lt.s32.totalorder %v2378, 16
  %vm2395 = vcmp.lt.s32.totalorder %v2379, 16
  %vm2396 = vcmp.lt.s32.totalorder %v2380, 16
  %vm2397 = vcmp.lt.s32.totalorder %v2381, 16
  %vm2398 = vcmp.lt.s32.totalorder %v2382, 16
  %vm2399 = vcmp.lt.s32.totalorder %v2383, 16
  %vm2400 = vcmp.lt.s32.totalorder %v2384, 16
  %vm2401 = vcmp.lt.s32.totalorder %v2385, 16
  %vm2402 = vcmp.lt.s32.totalorder %v2386, 16
  %vm2403 = vcmp.lt.s32.totalorder %v2387, 16
  %vm2404 = vcmp.lt.s32.totalorder %v2388, 16
  %vm2405 = vcmp.lt.s32.totalorder %v2389, 16
  %v2406 = vsel %vm2390, 1, 0
  %v2407 = vsel %vm2391, 1, 0
  %v2408 = vsel %vm2392, 1, 0
  %v2409 = vsel %vm2393, 1, 0
  %v2410 = vsel %vm2394, 1, 0
  %v2411 = vsel %vm2395, 1, 0
  %v2412 = vsel %vm2396, 1, 0
  %v2413 = vsel %vm2397, 1, 0
  %v2414 = vsel %vm2398, 1, 0
  %v2415 = vsel %vm2399, 1, 0
  %v2416 = vsel %vm2400, 1, 0
  %v2417 = vsel %vm2401, 1, 0
  %v2418 = vsel %vm2402, 1, 0
  %v2419 = vsel %vm2403, 1, 0
  %v2420 = vsel %vm2404, 1, 0
  %v2421 = vsel %vm2405, 1, 0
  %v2422 = vcvt.s32.f32 %v2406
  %v2423 = vcvt.s32.f32 %v2407
  %v2424 = vcvt.s32.f32 %v2408
  %v2425 = vcvt.s32.f32 %v2409
  %v2426 = vcvt.s32.f32 %v2410
  %v2427 = vcvt.s32.f32 %v2411
  %v2428 = vcvt.s32.f32 %v2412
  %v2429 = vcvt.s32.f32 %v2413
  %v2430 = vcvt.s32.f32 %v2414
  %v2431 = vcvt.s32.f32 %v2415
  %v2432 = vcvt.s32.f32 %v2416
  %v2433 = vcvt.s32.f32 %v2417
  %v2434 = vcvt.s32.f32 %v2418
  %v2435 = vcvt.s32.f32 %v2419
  %v2436 = vcvt.s32.f32 %v2420
  %v2437 = vcvt.s32.f32 %v2421
  %v2438 = vsel %vm1395, %v2422, 0.0
  %v2439 = vsel %vm1396, %v2423, 0.0
  %v2440 = vsel %vm1397, %v2424, 0.0
  %v2441 = vsel %vm1398, %v2425, 0.0
  %v2442 = vsel %vm1399, %v2426, 0.0
  %v2443 = vsel %vm1400, %v2427, 0.0
  %v2444 = vsel %vm1401, %v2428, 0.0
  %v2445 = vsel %vm1402, %v2429, 0.0
  %v2446 = vsel %vm1403, %v2430, 0.0
  %v2447 = vsel %vm1404, %v2431, 0.0
  %v2448 = vsel %vm1405, %v2432, 0.0
  %v2449 = vsel %vm1406, %v2433, 0.0
  %v2450 = vsel %vm1407, %v2434, 0.0
  %v2451 = vsel %vm1408, %v2435, 0.0
  %v2452 = vsel %vm1409, %v2436, 0.0
  %v2453 = vsel %vm1410, %v2437, 0.0
  %v2454 = vadd.f32 %v2438, %v2439
  %v2455 = vadd.f32 %v2454, %v2440
  %v2456 = vadd.f32 %v2455, %v2441
  %v2457 = vadd.f32 %v2456, %v2442
  %v2458 = vadd.f32 %v2457, %v2443
  %v2459 = vadd.f32 %v2458, %v2444
  %v2460 = vadd.f32 %v2459, %v2445
  %v2461 = vadd.f32 %v2460, %v2446
  %v2462 = vadd.f32 %v2461, %v2447
  %v2463 = vadd.f32 %v2462, %v2448
  %v2464 = vadd.f32 %v2463, %v2449
  %v2465 = vadd.f32 %v2464, %v2450
  %v2466 = vadd.f32 %v2465, %v2451
  %v2467 = vadd.f32 %v2466, %v2452
  %v2468 = vadd.f32 %v2467, %v2453
  %v2469 = vrot.slane %v2468, 4
  %v2470 = vadd.f32 %v2468, %v2469
  %v2471 = vrot.slane %v2470, 2
  %v2472 = vadd.f32 %v2470, %v2471
  %v2473 = vrot.slane %v2472, 1
  %v2474 = vadd.f32 %v2472, %v2473
  %v2475 = vstv %s2265
  %v2476 = vstv %s2354
  %v2477 = vperm.slane %v2474, 0
  %v2478 = vperm.slane %v2475, 0
  %v2479 = vperm.slane %v2476, 0
  %2480 = vst [vmem:[%s6] sm:$0xff] %v2477
  %2481 = vst [vmem:[%s6 + $0x8] sm:$0xff] %v2478
  %2482 = vst [vmem:[%s6 + $0x10] sm:$0xff] %v2479
  // Predicated region
  $region18: #{simple_pronet_vae_forward.1} parent=0 // pred_check
    _
  $region19: #{simple_pronet_vae_forward.1} parent=0 // pred_check_branch
    %2484 = sbr.rel (0) target = $region21
  $region20: #{simple_pronet_vae_forward.1} parent=0 // pred_region
    _
  $region21: #{simple_pronet_vae_forward.1} parent=0 // pred_fallthru
    _
  // Predicated region
  $region22: #{simple_pronet_vae_forward.1} parent=0 // pred_check
    _
  $region23: #{simple_pronet_vae_forward.1} parent=0 // pred_check_branch
    %2486 = sbr.rel (0) target = $region25
  $region24: #{simple_pronet_vae_forward.1} parent=0 // pred_region
    _
  $region25: #{simple_pronet_vae_forward.1} parent=0 // pred_fallthru
    _
  // Predicated region
  $region26: #{simple_pronet_vae_forward.1} parent=0 // pred_check
    _
  $region27: #{simple_pronet_vae_forward.1} parent=0 // pred_check_branch
    %2488 = sbr.rel (0) target = $region29
  $region28: #{simple_pronet_vae_forward.1} parent=0 // pred_region
    _
  $region29: #{simple_pronet_vae_forward.1} parent=0 // pred_fallthru
    _
  // Predicated region
  $region30: #{simple_pronet_vae_forward.1} parent=0 // pred_check
    _
  $region31: #{simple_pronet_vae_forward.1} parent=0 // pred_check_branch
    %2490 = sbr.rel (0) target = $region33
  $region32: #{simple_pronet_vae_forward.1} parent=0 // pred_region
    _
  $region33: #{simple_pronet_vae_forward.1} parent=0 // pred_fallthru
    _
  // Predicated region
  $region34: #{simple_pronet_vae_forward.1} parent=0 // pred_check
    _
  $region35: #{simple_pronet_vae_forward.1} parent=0 // pred_check_branch
    %2492 = sbr.rel (0) target = $region37
  $region36: #{simple_pronet_vae_forward.1} parent=0 // pred_region
    _
  $region37: #{simple_pronet_vae_forward.1} parent=0 // pred_fallthru
    _
  // Predicated region
  $region38: #{simple_pronet_vae_forward.1} parent=0 // pred_check
    _
  $region39: #{simple_pronet_vae_forward.1} parent=0 // pred_check_branch
    %2494 = sbr.rel (0) target = $region41
  $region40: #{simple_pronet_vae_forward.1} parent=0 // pred_region
    _
  $region41: #{simple_pronet_vae_forward.1} parent=0 // pred_fallthru
    _

</llo_original>
